<compile_context>
chip_gen: v7x
topology: tpu7x:2x2x1
jax: 0.10.0
libtpu: 0.0.40
codegen_flags: <defaults>
</compile_context>

<pallas_src>
import jax
import jax.numpy as jnp
from jax import lax
from jax.experimental import pallas as pl
from jax.experimental.pallas import tpu as pltpu

NORM_CHANNELS = 8
EPS = 1e-5


# ----------------------------------------------------------------------------
# Plain-JAX glue
# ----------------------------------------------------------------------------
def _dilate(x, stride):
    """Insert (stride-1) zeros between samples along time (for ConvTranspose1d)."""
    if stride == 1:
        return x
    B, C, L = x.shape
    z = jnp.zeros((B, C, L, stride), x.dtype).at[:, :, :, 0].set(x)
    return z.reshape(B, C, L * stride)[:, :, : (L - 1) * stride + 1]


def center_crop(x, target_len):
    diff = x.shape[-1] - target_len
    assert diff % 2 == 0 and diff >= 0
    crop = diff // 2
    if crop == 0:
        return x
    return x[:, :, crop:-crop]


def _flatten_weight(w_ock):
    """(Cout, Cin, K) -> (Cout, K*Cin), row index k*Cin + c (matches im2col)."""
    Cout, Cin, K = w_ock.shape
    return jnp.transpose(w_ock, (0, 2, 1)).reshape(Cout, K * Cin)


# ----------------------------------------------------------------------------
# One-time parameter packing (kept out of the hot path)
# ----------------------------------------------------------------------------
def pack_upsampling_block(params, *, kernel_size, stride, in_length,
                          shortcut_length):
    K = kernel_size
    Ldil = (in_length - 1) * stride + 1

    w_mats, aff_cols = [], []

    def add_matrix(mat):
        off = sum(int(m.shape[0]) for m in w_mats)
        w_mats.append(mat)
        return off

    def add_affine(p, cout):
        off = sum(int(a.shape[0]) for a in aff_cols)
        aff_cols.append(jnp.concatenate(
            [p["bias"], p["gn_weight"], p["gn_bias"]]
        ).reshape(3 * cout, 1).astype(jnp.float32))
        return off

    def group_matrix(cout, lout):
        # Block-diagonal "sum over my group, broadcast back to channels",
        # pre-scaled by 1/(group_size * lout): one tiny MXU matmul produces all
        # per-group means / second moments at once.
        gid = jnp.arange(cout) // NORM_CHANNELS
        g = (gid[:, None] == gid[None, :]).astype(jnp.float32)
        return g / float(NORM_CHANNELS * lout)

    # ---- main chain: upconv (valid conv on the zero-dilated input with the
    # channel-swapped, kernel-flipped weight) followed by the pre convs.
    W_up = jnp.flip(jnp.transpose(params["upconv"]["weight"], (1, 0, 2)), axis=-1)
    main_specs = [(W_up, params["upconv"])] + [(p["weight"], p) for p in params["pre"]]

    main_metas = []
    L = Ldil
    for W, p in main_specs:
        Cout, Cin, _ = W.shape
        lout = L - K + 1
        assert lout > 0, "ConvLayer output length must be positive"
        assert Cout % NORM_CHANNELS == 0, "GroupNorm needs Cout % 8 == 0"
        w_off = add_matrix(_flatten_weight(W).astype(jnp.float32))
        g_off = add_matrix(group_matrix(Cout, lout))
        a_off = add_affine(p, Cout)
        main_metas.append(dict(cout=Cout, lout=lout,
                               w_slices=((w_off, K * Cin),),
                               g_off=g_off, aff_off=a_off))
        L = lout
    L_up = L
    C_up = main_metas[-1]["cout"]

    assert shortcut_length >= L_up and (shortcut_length - L_up) % 2 == 0

    # ---- post chain: channel concat replaced by split weights (two
    # accumulated matmuls); crop of `up` folded into im2col slice offsets.
    post_metas = []
    L_comb = L_up
    for p in params["post"]:
        W = p["weight"]
        Cout, Cin_total, _ = W.shape
        Ccomb = Cin_total - C_up
        assert Ccomb >= 1
        lout = L_comb - K + 1
        assert lout > 0 and Cout % NORM_CHANNELS == 0
        crop = (L_up - L_comb) // 2
        wc_off = add_matrix(_flatten_weight(W[:, :Ccomb, :]).astype(jnp.float32))
        wu_off = add_matrix(_flatten_weight(W[:, Ccomb:, :]).astype(jnp.float32))
        g_off = add_matrix(group_matrix(Cout, lout))
        a_off = add_affine(p, Cout)
        post_metas.append(dict(cout=Cout, lout=lout, crop=crop,
                               w_slices=((wc_off, K * Ccomb), (wu_off, K * C_up)),
                               g_off=g_off, aff_off=a_off))
        L_comb = lout

    max_cols = max(int(m.shape[1]) for m in w_mats)
    w_slab = jnp.concatenate(
        [jnp.pad(m, ((0, 0), (0, max_cols - int(m.shape[1])))) for m in w_mats],
        axis=0)
    aff_slab = jnp.concatenate(aff_cols, axis=0)

    return dict(w_slab=w_slab, aff_slab=aff_slab,
                main_metas=tuple(main_metas), post_metas=tuple(post_metas),
                K=K, stride=stride, Ldil=Ldil, L_up=L_up,
                out_len=L_comb, out_channels=post_metas[-1]["cout"])


# ----------------------------------------------------------------------------
# Fused Pallas forward pass for the whole UpsamplingBlock
# ----------------------------------------------------------------------------
def upsampling_block_forward_pallas(x, shortcut, pack):
    B, _, _ = x.shape
    K = pack["K"]
    main_metas, post_metas = pack["main_metas"], pack["post_metas"]
    L_up, L_fin, Cout_fin = pack["L_up"], pack["out_len"], pack["out_channels"]
    dtype = x.dtype

    xd = _dilate(x, pack["stride"])                      # (B, Cin0, Ldil)
    assert xd.shape[-1] == pack["Ldil"]
    sc = center_crop(shortcut, L_up)                     # (B, Csc, L_up)

    def kernel(xd_ref, sc_ref, w_ref, aff_ref, o_ref):
        def im2col(src, lout, crop):
            # Batch packed into the matmul lane (N) dim: (K*Cin, B*lout),
            # lanes laid out batch-major.
            cols = []
            for b in range(B):
                a = src[b]
                pieces = [a[:, crop + k: crop + k + lout] for k in range(K)]
                cols.append(pieces[0] if K == 1 else jnp.concatenate(pieces, axis=0))
            return cols[0] if B == 1 else jnp.concatenate(cols, axis=1)

        def conv_gn_relu(meta, operands):
            cout, lout = meta["cout"], meta["lout"]
            # One matmul per operand, accumulated (post layers have two:
            # combined-part and up-part of the split weight).
            acc = None
            for (w_off, w_cols), (src, crop) in zip(meta["w_slices"], operands):
                stacked = im2col(src, lout, crop)
                w = w_ref[w_off:w_off + cout, 0:w_cols]
                part = jnp.dot(w, stacked, preferred_element_type=jnp.float32)
                acc = part if acc is None else acc + part
            a_off = meta["aff_off"]
            bias = aff_ref[a_off:a_off + cout, :]
            gamma = aff_ref[a_off + cout:a_off + 2 * cout, :]
            beta = aff_ref[a_off + 2 * cout:a_off + 3 * cout, :]
            gmat = w_ref[meta["g_off"]:meta["g_off"] + cout, 0:cout]
            acc = acc + bias                              # (cout, B*lout) + (cout,1)

            # GroupNorm (per batch element): column-shaped stats broadcast
            # along lanes; group-sum + channel broadcast done by one tiny
            # MXU matmul; single vectorized rsqrt across all groups.
            outs = []
            for b in range(B):
                seg = acc[:, b * lout:(b + 1) * lout]
                s1 = jnp.sum(seg, axis=1, keepdims=True)            # (cout, 1)
                s2 = jnp.sum(seg * seg, axis=1, keepdims=True)      # (cout, 1)
                moments = jnp.dot(gmat, jnp.concatenate([s1, s2], axis=1),
                                  preferred_element_type=jnp.float32)
                mu = moments[:, 0:1]
                var = jnp.maximum(moments[:, 1:2] - mu * mu, 0.0)
                inv = lax.rsqrt(var + EPS)
                out = (seg - mu) * (inv * gamma) + beta
                outs.append(jnp.maximum(out, 0.0))
            return outs

        # Main chain (upconv + pre convs); everything stays in VMEM/vregs.
        cur = [xd_ref[b] for b in range(B)]
        for meta in main_metas:
            cur = conv_gn_relu(meta, [(cur, 0)])
        up = cur                                          # per-batch (C_up, L_up)

        # Post chain: combined starts as the cropped shortcut.
        combined = [sc_ref[b] for b in range(B)]
        for meta in post_metas:
            combined = conv_gn_relu(meta, [(combined, 0), (up, meta["crop"])])

        # Direct per-batch store (one tiny masked store each) — no padded temp.
        for b in range(B):
            o_ref[b] = combined[b].astype(o_ref.dtype)

    # Single gridless invocation; whole-array operands resident in VMEM.
    # TODO(synk): for production L/B, re-derive the VMEM budget (sum over
    # layers of Cout*B*L*4B + the K*Cin*B*L im2col slab) and add a time-axis
    # grid with a (K-1) halo instead of the whole-time-resident plan.
    # TODO(synk): cast matmul operands to bf16 (keep f32 accumulate/epilogue)
    # once shapes are large enough for MXU rate to matter.
    vmem_specs = [pl.BlockSpec(memory_space=pltpu.MemorySpace.VMEM)
                  for _ in range(4)]
    out = pl.pallas_call(
        kernel,
        out_shape=jax.ShapeDtypeStruct((B, Cout_fin, L_fin), dtype),
        in_specs=vmem_specs,
        out_specs=pl.BlockSpec(memory_space=pltpu.MemorySpace.VMEM),
    )(xd, sc, pack["w_slab"], pack["aff_slab"])
    return out


# ----------------------------------------------------------------------------
# Pure-JAX reference (correctness check only; mirrors PyTorch layer-by-layer)
# ----------------------------------------------------------------------------
def _conv_gn_relu_ref(x, W, bias, gamma, beta, *, groups):
    B, Cin, L = x.shape
    Cout, _, K = W.shape
    Lout = L - K + 1
    acc = jnp.zeros((B, Cout, Lout), jnp.float32)
    for k in range(K):
        acc = acc + jnp.einsum("oc,bcl->bol", W[:, :, k], x[:, :, k:k + Lout])
    acc = acc + bias[None, :, None]
    g = acc.reshape(B, groups, (Cout // groups) * Lout)
    mu = jnp.mean(g, axis=-1, keepdims=True)
    var = jnp.mean((g - mu) ** 2, axis=-1, keepdims=True)
    norm = ((g - mu) / jnp.sqrt(var + EPS)).reshape(B, Cout, Lout)
    return jnp.maximum(norm * gamma[None, :, None] + beta[None, :, None], 0.0)


def _conv_layer_ref(x, p, *, kernel_size, stride, transpose):
    if transpose:
        xd = _dilate(x, stride)
        W = jnp.flip(jnp.transpose(p["weight"], (1, 0, 2)), axis=-1)
    else:
        assert stride == 1
        xd = x
        W = p["weight"]
    Cout = W.shape[0]
    return _conv_gn_relu_ref(xd, W, p["bias"], p["gn_weight"], p["gn_bias"],
                             groups=Cout // NORM_CHANNELS)


def upsampling_block_forward_ref(x, shortcut, params, *, kernel_size, stride):
    up = _conv_layer_ref(x, params["upconv"], kernel_size=kernel_size,
                         stride=stride, transpose=True)
    for p in params["pre"]:
        up = _conv_layer_ref(up, p, kernel_size=kernel_size, stride=1,
                             transpose=False)
    combined = center_crop(shortcut, up.shape[-1])
    for p in params["post"]:
        inp = jnp.concatenate(
            [combined, center_crop(up, combined.shape[-1])], axis=1)
        combined = _conv_layer_ref(inp, p, kernel_size=kernel_size, stride=1,
                                   transpose=False)
    return combined


# ----------------------------------------------------------------------------
# Deterministic parameter initialization (shapes follow the PyTorch __init__)
# ----------------------------------------------------------------------------
def init_conv_layer(key, n_in, n_out, k, transpose):
    k1, k2, k3, k4 = jax.random.split(key, 4)
    w_shape = (n_in, n_out, k) if transpose else (n_out, n_in, k)
    return dict(
        weight=0.1 * jax.random.normal(k1, w_shape, jnp.float32),
        bias=0.05 * jax.random.normal(k2, (n_out,), jnp.float32),
        gn_weight=1.0 + 0.1 * jax.random.normal(k3, (n_out,), jnp.float32),
        gn_bias=0.05 * jax.random.normal(k4, (n_out,), jnp.float32),
    )


def init_upsampling_block(key, n_inputs, n_shortcut, n_outputs, kernel_size,
                          depth):
    keys = jax.random.split(key, 1 + 2 * depth)
    upconv = init_conv_layer(keys[0], n_inputs, n_inputs, kernel_size, True)
    pre = [init_conv_layer(keys[1], n_inputs, n_outputs, kernel_size, False)]
    pre += [init_conv_layer(keys[1 + i], n_outputs, n_outputs, kernel_size, False)
            for i in range(1, depth)]
    post = [init_conv_layer(keys[1 + depth], n_outputs + n_shortcut, n_outputs,
                            kernel_size, False)]
    post += [init_conv_layer(keys[1 + depth + i], n_outputs, n_outputs,
                             kernel_size, False) for i in range(1, depth)]
    return dict(upconv=upconv, pre=pre, post=post)


# ----------------------------------------------------------------------------
if __name__ == "__main__":
    # UpsamplingBlock(n_inputs=8, n_shortcut=8, n_outputs=16, kernel=5,
    #                 stride=2, depth=1)
    n_inputs, n_shortcut, n_outputs = 8, 8, 16
    kernel_size, stride, depth = 5, 2, 1
    B, L_in = 2, 16
    # upconv: 16 -> 27 ; pre conv: 27 -> 23 ; crop shortcut 27 -> 23 ; post -> 19
    L_shortcut = 27

    key = jax.random.PRNGKey(0)
    kx, ks, kp = jax.random.split(key, 3)
    x = jax.random.normal(kx, (B, n_inputs, L_in), jnp.float32)
    shortcut = jax.random.normal(ks, (B, n_shortcut, L_shortcut), jnp.float32)
    params = init_upsampling_block(kp, n_inputs, n_shortcut, n_outputs,
                                   kernel_size, depth)

    pack = pack_upsampling_block(params, kernel_size=kernel_size, stride=stride,
                                 in_length=L_in, shortcut_length=L_shortcut)

    out = upsampling_block_forward_pallas(x, shortcut, pack)
    out = jax.block_until_ready(out)

    ref = upsampling_block_forward_ref(
        x, shortcut, params, kernel_size=kernel_size, stride=stride)
    ref = jax.block_until_ready(ref)

    assert out.shape == (B, n_outputs, 19), out.shape
    max_err = float(jnp.max(jnp.abs(out - ref)))
    assert jnp.allclose(out, ref, atol=2e-3, rtol=2e-3), max_err
    print("KERNEL_OK")
</pallas_src>

<mosaic_0001>
module attributes {stable_mosaic.version = 11 : i64} {
  func.func @kernel(%arg0: memref<2x8x31xf32, #tpu.memory_space<vmem>>, %arg1: memref<2x8x23xf32, #tpu.memory_space<vmem>>, %arg2: memref<96x80xf32, #tpu.memory_space<vmem>>, %arg3: memref<120x1xf32, #tpu.memory_space<vmem>>, %arg4: memref<2x16x19xf32, #tpu.memory_space<vmem>>) attributes {dimension_semantics = [], scalar_prefetch = 0 : i64, scratch_operands = 0 : i64, tpu.core_type = #tpu.core_type<tc>} {
    %c0 = arith.constant 0 : index
    %c0_0 = arith.constant 0 : index
    %c0_1 = arith.constant 0 : index
    %0 = vector.load %arg0[%c0, %c0_0, %c0_1] : memref<2x8x31xf32, #tpu.memory_space<vmem>>, vector<1x8x31xf32>
    %1 = vector.shape_cast %0 : vector<1x8x31xf32> to vector<8x31xf32>
    %c1 = arith.constant 1 : index
    %c0_2 = arith.constant 0 : index
    %c0_3 = arith.constant 0 : index
    %2 = vector.load %arg0[%c1, %c0_2, %c0_3] : memref<2x8x31xf32, #tpu.memory_space<vmem>>, vector<1x8x31xf32>
    %3 = vector.shape_cast %2 : vector<1x8x31xf32> to vector<8x31xf32>
    %4 = vector.extract_strided_slice %1 {offsets = [0, 0], sizes = [8, 27], strides = [1, 1]} : vector<8x31xf32> to vector<8x27xf32>
    %5 = vector.extract_strided_slice %1 {offsets = [0, 1], sizes = [8, 27], strides = [1, 1]} : vector<8x31xf32> to vector<8x27xf32>
    %6 = vector.extract_strided_slice %1 {offsets = [0, 2], sizes = [8, 27], strides = [1, 1]} : vector<8x31xf32> to vector<8x27xf32>
    %7 = vector.extract_strided_slice %1 {offsets = [0, 3], sizes = [8, 27], strides = [1, 1]} : vector<8x31xf32> to vector<8x27xf32>
    %8 = vector.extract_strided_slice %1 {offsets = [0, 4], sizes = [8, 27], strides = [1, 1]} : vector<8x31xf32> to vector<8x27xf32>
    %9 = tpu.concatenate %4, %5, %6, %7, %8 in 0 : vector<8x27xf32>, vector<8x27xf32>, vector<8x27xf32>, vector<8x27xf32>, vector<8x27xf32> -> vector<40x27xf32>
    %10 = vector.extract_strided_slice %3 {offsets = [0, 0], sizes = [8, 27], strides = [1, 1]} : vector<8x31xf32> to vector<8x27xf32>
    %11 = vector.extract_strided_slice %3 {offsets = [0, 1], sizes = [8, 27], strides = [1, 1]} : vector<8x31xf32> to vector<8x27xf32>
    %12 = vector.extract_strided_slice %3 {offsets = [0, 2], sizes = [8, 27], strides = [1, 1]} : vector<8x31xf32> to vector<8x27xf32>
    %13 = vector.extract_strided_slice %3 {offsets = [0, 3], sizes = [8, 27], strides = [1, 1]} : vector<8x31xf32> to vector<8x27xf32>
    %14 = vector.extract_strided_slice %3 {offsets = [0, 4], sizes = [8, 27], strides = [1, 1]} : vector<8x31xf32> to vector<8x27xf32>
    %15 = tpu.concatenate %10, %11, %12, %13, %14 in 0 : vector<8x27xf32>, vector<8x27xf32>, vector<8x27xf32>, vector<8x27xf32>, vector<8x27xf32> -> vector<40x27xf32>
    %16 = tpu.concatenate %9, %15 in 1 : vector<40x27xf32>, vector<40x27xf32> -> vector<40x54xf32>
    %c0_4 = arith.constant 0 : index
    %c0_5 = arith.constant 0 : index
    %17 = vector.load %arg2[%c0_4, %c0_5] : memref<96x80xf32, #tpu.memory_space<vmem>>, vector<8x40xf32>
    %cst = arith.constant dense<0.000000e+00> : vector<8x54xf32>
    %18 = tpu.matmul %17, %16, %cst {dimension_numbers = #tpu.dot_dimension_numbers<[1], [0], [0], [1], [0, 0, 1, 1], [], []>} : vector<8x40xf32>, vector<40x54xf32>, vector<8x54xf32> -> vector<8x54xf32>
    %c0_6 = arith.constant 0 : index
    %c0_7 = arith.constant 0 : index
    %19 = vector.load %arg3[%c0_6, %c0_7] : memref<120x1xf32, #tpu.memory_space<vmem>>, vector<8x1xf32>
    %c8 = arith.constant 8 : index
    %c0_8 = arith.constant 0 : index
    %20 = vector.load %arg3[%c8, %c0_8] : memref<120x1xf32, #tpu.memory_space<vmem>>, vector<8x1xf32>
    %c16 = arith.constant 16 : index
    %c0_9 = arith.constant 0 : index
    %21 = vector.load %arg3[%c16, %c0_9] : memref<120x1xf32, #tpu.memory_space<vmem>>, vector<8x1xf32>
    %c8_10 = arith.constant 8 : index
    %c0_11 = arith.constant 0 : index
    %22 = vector.load %arg2[%c8_10, %c0_11] : memref<96x80xf32, #tpu.memory_space<vmem>>, vector<8x8xf32>
    %23 = vector.broadcast %19 : vector<8x1xf32> to vector<8x54xf32>
    %24 = arith.addf %18, %23 : vector<8x54xf32>
    %25 = vector.extract_strided_slice %24 {offsets = [0, 0], sizes = [8, 27], strides = [1, 1]} : vector<8x54xf32> to vector<8x27xf32>
    %cst_12 = arith.constant dense<0.000000e+00> : vector<8xf32>
    %26 = vector.multi_reduction <add>, %25, %cst_12 [1] : vector<8x27xf32> to vector<8xf32>
    %27 = vector.shape_cast %26 : vector<8xf32> to vector<8x1xf32>
    %28 = arith.mulf %25, %25 : vector<8x27xf32>
    %cst_13 = arith.constant dense<0.000000e+00> : vector<8xf32>
    %29 = vector.multi_reduction <add>, %28, %cst_13 [1] : vector<8x27xf32> to vector<8xf32>
    %30 = vector.shape_cast %29 : vector<8xf32> to vector<8x1xf32>
    %31 = tpu.concatenate %27, %30 in 1 : vector<8x1xf32>, vector<8x1xf32> -> vector<8x2xf32>
    %cst_14 = arith.constant dense<0.000000e+00> : vector<8x2xf32>
    %32 = tpu.matmul %22, %31, %cst_14 {dimension_numbers = #tpu.dot_dimension_numbers<[1], [0], [0], [1], [0, 0, 1, 1], [], []>} : vector<8x8xf32>, vector<8x2xf32>, vector<8x2xf32> -> vector<8x2xf32>
    %33 = vector.extract_strided_slice %32 {offsets = [0, 0], sizes = [8, 1], strides = [1, 1]} : vector<8x2xf32> to vector<8x1xf32>
    %34 = vector.extract_strided_slice %32 {offsets = [0, 1], sizes = [8, 1], strides = [1, 1]} : vector<8x2xf32> to vector<8x1xf32>
    %35 = arith.mulf %33, %33 : vector<8x1xf32>
    %36 = arith.subf %34, %35 : vector<8x1xf32>
    %cst_15 = arith.constant 0.000000e+00 : f32
    %37 = vector.broadcast %cst_15 : f32 to vector<8x1xf32>
    %38 = arith.maximumf %36, %37 : vector<8x1xf32>
    %cst_16 = arith.constant 9.99999974E-6 : f32
    %39 = vector.broadcast %cst_16 : f32 to vector<8x1xf32>
    %40 = arith.addf %38, %39 : vector<8x1xf32>
    %41 = math.rsqrt %40 : vector<8x1xf32>
    %42 = vector.broadcast %33 : vector<8x1xf32> to vector<8x27xf32>
    %43 = arith.subf %25, %42 : vector<8x27xf32>
    %44 = arith.mulf %41, %20 : vector<8x1xf32>
    %45 = vector.broadcast %44 : vector<8x1xf32> to vector<8x27xf32>
    %46 = arith.mulf %43, %45 : vector<8x27xf32>
    %47 = vector.broadcast %21 : vector<8x1xf32> to vector<8x27xf32>
    %48 = arith.addf %46, %47 : vector<8x27xf32>
    %cst_17 = arith.constant 0.000000e+00 : f32
    %49 = vector.broadcast %cst_17 : f32 to vector<8x27xf32>
    %50 = arith.maximumf %48, %49 : vector<8x27xf32>
    %51 = vector.extract_strided_slice %24 {offsets = [0, 27], sizes = [8, 27], strides = [1, 1]} : vector<8x54xf32> to vector<8x27xf32>
    %cst_18 = arith.constant dense<0.000000e+00> : vector<8xf32>
    %52 = vector.multi_reduction <add>, %51, %cst_18 [1] : vector<8x27xf32> to vector<8xf32>
    %53 = vector.shape_cast %52 : vector<8xf32> to vector<8x1xf32>
    %54 = arith.mulf %51, %51 : vector<8x27xf32>
    %cst_19 = arith.constant dense<0.000000e+00> : vector<8xf32>
    %55 = vector.multi_reduction <add>, %54, %cst_19 [1] : vector<8x27xf32> to vector<8xf32>
    %56 = vector.shape_cast %55 : vector<8xf32> to vector<8x1xf32>
    %57 = tpu.concatenate %53, %56 in 1 : vector<8x1xf32>, vector<8x1xf32> -> vector<8x2xf32>
    %cst_20 = arith.constant dense<0.000000e+00> : vector<8x2xf32>
    %58 = tpu.matmul %22, %57, %cst_20 {dimension_numbers = #tpu.dot_dimension_numbers<[1], [0], [0], [1], [0, 0, 1, 1], [], []>} : vector<8x8xf32>, vector<8x2xf32>, vector<8x2xf32> -> vector<8x2xf32>
    %59 = vector.extract_strided_slice %58 {offsets = [0, 0], sizes = [8, 1], strides = [1, 1]} : vector<8x2xf32> to vector<8x1xf32>
    %60 = vector.extract_strided_slice %58 {offsets = [0, 1], sizes = [8, 1], strides = [1, 1]} : vector<8x2xf32> to vector<8x1xf32>
    %61 = arith.mulf %59, %59 : vector<8x1xf32>
    %62 = arith.subf %60, %61 : vector<8x1xf32>
    %cst_21 = arith.constant 0.000000e+00 : f32
    %63 = vector.broadcast %cst_21 : f32 to vector<8x1xf32>
    %64 = arith.maximumf %62, %63 : vector<8x1xf32>
    %cst_22 = arith.constant 9.99999974E-6 : f32
    %65 = vector.broadcast %cst_22 : f32 to vector<8x1xf32>
    %66 = arith.addf %64, %65 : vector<8x1xf32>
    %67 = math.rsqrt %66 : vector<8x1xf32>
    %68 = vector.broadcast %59 : vector<8x1xf32> to vector<8x27xf32>
    %69 = arith.subf %51, %68 : vector<8x27xf32>
    %70 = arith.mulf %67, %20 : vector<8x1xf32>
    %71 = vector.broadcast %70 : vector<8x1xf32> to vector<8x27xf32>
    %72 = arith.mulf %69, %71 : vector<8x27xf32>
    %73 = vector.broadcast %21 : vector<8x1xf32> to vector<8x27xf32>
    %74 = arith.addf %72, %73 : vector<8x27xf32>
    %cst_23 = arith.constant 0.000000e+00 : f32
    %75 = vector.broadcast %cst_23 : f32 to vector<8x27xf32>
    %76 = arith.maximumf %74, %75 : vector<8x27xf32>
    %77 = vector.extract_strided_slice %50 {offsets = [0, 0], sizes = [8, 23], strides = [1, 1]} : vector<8x27xf32> to vector<8x23xf32>
    %78 = vector.extract_strided_slice %50 {offsets = [0, 1], sizes = [8, 23], strides = [1, 1]} : vector<8x27xf32> to vector<8x23xf32>
    %79 = vector.extract_strided_slice %50 {offsets = [0, 2], sizes = [8, 23], strides = [1, 1]} : vector<8x27xf32> to vector<8x23xf32>
    %80 = vector.extract_strided_slice %50 {offsets = [0, 3], sizes = [8, 23], strides = [1, 1]} : vector<8x27xf32> to vector<8x23xf32>
    %81 = vector.extract_strided_slice %50 {offsets = [0, 4], sizes = [8, 23], strides = [1, 1]} : vector<8x27xf32> to vector<8x23xf32>
    %82 = tpu.concatenate %77, %78, %79, %80, %81 in 0 : vector<8x23xf32>, vector<8x23xf32>, vector<8x23xf32>, vector<8x23xf32>, vector<8x23xf32> -> vector<40x23xf32>
    %83 = vector.extract_strided_slice %76 {offsets = [0, 0], sizes = [8, 23], strides = [1, 1]} : vector<8x27xf32> to vector<8x23xf32>
    %84 = vector.extract_strided_slice %76 {offsets = [0, 1], sizes = [8, 23], strides = [1, 1]} : vector<8x27xf32> to vector<8x23xf32>
    %85 = vector.extract_strided_slice %76 {offsets = [0, 2], sizes = [8, 23], strides = [1, 1]} : vector<8x27xf32> to vector<8x23xf32>
    %86 = vector.extract_strided_slice %76 {offsets = [0, 3], sizes = [8, 23], strides = [1, 1]} : vector<8x27xf32> to vector<8x23xf32>
    %87 = vector.extract_strided_slice %76 {offsets = [0, 4], sizes = [8, 23], strides = [1, 1]} : vector<8x27xf32> to vector<8x23xf32>
    %88 = tpu.concatenate %83, %84, %85, %86, %87 in 0 : vector<8x23xf32>, vector<8x23xf32>, vector<8x23xf32>, vector<8x23xf32>, vector<8x23xf32> -> vector<40x23xf32>
    %89 = tpu.concatenate %82, %88 in 1 : vector<40x23xf32>, vector<40x23xf32> -> vector<40x46xf32>
    %c16_24 = arith.constant 16 : index
    %c0_25 = arith.constant 0 : index
    %90 = vector.load %arg2[%c16_24, %c0_25] : memref<96x80xf32, #tpu.memory_space<vmem>>, vector<16x40xf32>
    %cst_26 = arith.constant dense<0.000000e+00> : vector<16x46xf32>
    %91 = tpu.matmul %90, %89, %cst_26 {dimension_numbers = #tpu.dot_dimension_numbers<[1], [0], [0], [1], [0, 0, 1, 1], [], []>} : vector<16x40xf32>, vector<40x46xf32>, vector<16x46xf32> -> vector<16x46xf32>
    %c24 = arith.constant 24 : index
    %c0_27 = arith.constant 0 : index
    %92 = vector.load %arg3[%c24, %c0_27] : memref<120x1xf32, #tpu.memory_space<vmem>>, vector<16x1xf32>
    %c40 = arith.constant 40 : index
    %c0_28 = arith.constant 0 : index
    %93 = vector.load %arg3[%c40, %c0_28] : memref<120x1xf32, #tpu.memory_space<vmem>>, vector<16x1xf32>
    %c56 = arith.constant 56 : index
    %c0_29 = arith.constant 0 : index
    %94 = vector.load %arg3[%c56, %c0_29] : memref<120x1xf32, #tpu.memory_space<vmem>>, vector<16x1xf32>
    %c32 = arith.constant 32 : index
    %c0_30 = arith.constant 0 : index
    %95 = vector.load %arg2[%c32, %c0_30] : memref<96x80xf32, #tpu.memory_space<vmem>>, vector<16x16xf32>
    %96 = vector.broadcast %92 : vector<16x1xf32> to vector<16x46xf32>
    %97 = arith.addf %91, %96 : vector<16x46xf32>
    %98 = vector.extract_strided_slice %97 {offsets = [0, 0], sizes = [16, 23], strides = [1, 1]} : vector<16x46xf32> to vector<16x23xf32>
    %cst_31 = arith.constant dense<0.000000e+00> : vector<16xf32>
    %99 = vector.multi_reduction <add>, %98, %cst_31 [1] : vector<16x23xf32> to vector<16xf32>
    %100 = vector.shape_cast %99 : vector<16xf32> to vector<16x1xf32>
    %101 = arith.mulf %98, %98 : vector<16x23xf32>
    %cst_32 = arith.constant dense<0.000000e+00> : vector<16xf32>
    %102 = vector.multi_reduction <add>, %101, %cst_32 [1] : vector<16x23xf32> to vector<16xf32>
    %103 = vector.shape_cast %102 : vector<16xf32> to vector<16x1xf32>
    %104 = tpu.concatenate %100, %103 in 1 : vector<16x1xf32>, vector<16x1xf32> -> vector<16x2xf32>
    %cst_33 = arith.constant dense<0.000000e+00> : vector<16x2xf32>
    %105 = tpu.matmul %95, %104, %cst_33 {dimension_numbers = #tpu.dot_dimension_numbers<[1], [0], [0], [1], [0, 0, 1, 1], [], []>} : vector<16x16xf32>, vector<16x2xf32>, vector<16x2xf32> -> vector<16x2xf32>
    %106 = vector.extract_strided_slice %105 {offsets = [0, 0], sizes = [16, 1], strides = [1, 1]} : vector<16x2xf32> to vector<16x1xf32>
    %107 = vector.extract_strided_slice %105 {offsets = [0, 1], sizes = [16, 1], strides = [1, 1]} : vector<16x2xf32> to vector<16x1xf32>
    %108 = arith.mulf %106, %106 : vector<16x1xf32>
    %109 = arith.subf %107, %108 : vector<16x1xf32>
    %cst_34 = arith.constant 0.000000e+00 : f32
    %110 = vector.broadcast %cst_34 : f32 to vector<16x1xf32>
    %111 = arith.maximumf %109, %110 : vector<16x1xf32>
    %cst_35 = arith.constant 9.99999974E-6 : f32
    %112 = vector.broadcast %cst_35 : f32 to vector<16x1xf32>
    %113 = arith.addf %111, %112 : vector<16x1xf32>
    %114 = math.rsqrt %113 : vector<16x1xf32>
    %115 = vector.broadcast %106 : vector<16x1xf32> to vector<16x23xf32>
    %116 = arith.subf %98, %115 : vector<16x23xf32>
    %117 = arith.mulf %114, %93 : vector<16x1xf32>
    %118 = vector.broadcast %117 : vector<16x1xf32> to vector<16x23xf32>
    %119 = arith.mulf %116, %118 : vector<16x23xf32>
    %120 = vector.broadcast %94 : vector<16x1xf32> to vector<16x23xf32>
    %121 = arith.addf %119, %120 : vector<16x23xf32>
    %cst_36 = arith.constant 0.000000e+00 : f32
    %122 = vector.broadcast %cst_36 : f32 to vector<16x23xf32>
    %123 = arith.maximumf %121, %122 : vector<16x23xf32>
    %124 = vector.extract_strided_slice %97 {offsets = [0, 23], sizes = [16, 23], strides = [1, 1]} : vector<16x46xf32> to vector<16x23xf32>
    %cst_37 = arith.constant dense<0.000000e+00> : vector<16xf32>
    %125 = vector.multi_reduction <add>, %124, %cst_37 [1] : vector<16x23xf32> to vector<16xf32>
    %126 = vector.shape_cast %125 : vector<16xf32> to vector<16x1xf32>
    %127 = arith.mulf %124, %124 : vector<16x23xf32>
    %cst_38 = arith.constant dense<0.000000e+00> : vector<16xf32>
    %128 = vector.multi_reduction <add>, %127, %cst_38 [1] : vector<16x23xf32> to vector<16xf32>
    %129 = vector.shape_cast %128 : vector<16xf32> to vector<16x1xf32>
    %130 = tpu.concatenate %126, %129 in 1 : vector<16x1xf32>, vector<16x1xf32> -> vector<16x2xf32>
    %cst_39 = arith.constant dense<0.000000e+00> : vector<16x2xf32>
    %131 = tpu.matmul %95, %130, %cst_39 {dimension_numbers = #tpu.dot_dimension_numbers<[1], [0], [0], [1], [0, 0, 1, 1], [], []>} : vector<16x16xf32>, vector<16x2xf32>, vector<16x2xf32> -> vector<16x2xf32>
    %132 = vector.extract_strided_slice %131 {offsets = [0, 0], sizes = [16, 1], strides = [1, 1]} : vector<16x2xf32> to vector<16x1xf32>
    %133 = vector.extract_strided_slice %131 {offsets = [0, 1], sizes = [16, 1], strides = [1, 1]} : vector<16x2xf32> to vector<16x1xf32>
    %134 = arith.mulf %132, %132 : vector<16x1xf32>
    %135 = arith.subf %133, %134 : vector<16x1xf32>
    %cst_40 = arith.constant 0.000000e+00 : f32
    %136 = vector.broadcast %cst_40 : f32 to vector<16x1xf32>
    %137 = arith.maximumf %135, %136 : vector<16x1xf32>
    %cst_41 = arith.constant 9.99999974E-6 : f32
    %138 = vector.broadcast %cst_41 : f32 to vector<16x1xf32>
    %139 = arith.addf %137, %138 : vector<16x1xf32>
    %140 = math.rsqrt %139 : vector<16x1xf32>
    %141 = vector.broadcast %132 : vector<16x1xf32> to vector<16x23xf32>
    %142 = arith.subf %124, %141 : vector<16x23xf32>
    %143 = arith.mulf %140, %93 : vector<16x1xf32>
    %144 = vector.broadcast %143 : vector<16x1xf32> to vector<16x23xf32>
    %145 = arith.mulf %142, %144 : vector<16x23xf32>
    %146 = vector.broadcast %94 : vector<16x1xf32> to vector<16x23xf32>
    %147 = arith.addf %145, %146 : vector<16x23xf32>
    %cst_42 = arith.constant 0.000000e+00 : f32
    %148 = vector.broadcast %cst_42 : f32 to vector<16x23xf32>
    %149 = arith.maximumf %147, %148 : vector<16x23xf32>
    %c0_43 = arith.constant 0 : index
    %c0_44 = arith.constant 0 : index
    %c0_45 = arith.constant 0 : index
    %150 = vector.load %arg1[%c0_43, %c0_44, %c0_45] : memref<2x8x23xf32, #tpu.memory_space<vmem>>, vector<1x8x23xf32>
    %151 = vector.shape_cast %150 : vector<1x8x23xf32> to vector<8x23xf32>
    %c1_46 = arith.constant 1 : index
    %c0_47 = arith.constant 0 : index
    %c0_48 = arith.constant 0 : index
    %152 = vector.load %arg1[%c1_46, %c0_47, %c0_48] : memref<2x8x23xf32, #tpu.memory_space<vmem>>, vector<1x8x23xf32>
    %153 = vector.shape_cast %152 : vector<1x8x23xf32> to vector<8x23xf32>
    %154 = vector.extract_strided_slice %151 {offsets = [0, 0], sizes = [8, 19], strides = [1, 1]} : vector<8x23xf32> to vector<8x19xf32>
    %155 = vector.extract_strided_slice %151 {offsets = [0, 1], sizes = [8, 19], strides = [1, 1]} : vector<8x23xf32> to vector<8x19xf32>
    %156 = vector.extract_strided_slice %151 {offsets = [0, 2], sizes = [8, 19], strides = [1, 1]} : vector<8x23xf32> to vector<8x19xf32>
    %157 = vector.extract_strided_slice %151 {offsets = [0, 3], sizes = [8, 19], strides = [1, 1]} : vector<8x23xf32> to vector<8x19xf32>
    %158 = vector.extract_strided_slice %151 {offsets = [0, 4], sizes = [8, 19], strides = [1, 1]} : vector<8x23xf32> to vector<8x19xf32>
    %159 = tpu.concatenate %154, %155, %156, %157, %158 in 0 : vector<8x19xf32>, vector<8x19xf32>, vector<8x19xf32>, vector<8x19xf32>, vector<8x19xf32> -> vector<40x19xf32>
    %160 = vector.extract_strided_slice %153 {offsets = [0, 0], sizes = [8, 19], strides = [1, 1]} : vector<8x23xf32> to vector<8x19xf32>
    %161 = vector.extract_strided_slice %153 {offsets = [0, 1], sizes = [8, 19], strides = [1, 1]} : vector<8x23xf32> to vector<8x19xf32>
    %162 = vector.extract_strided_slice %153 {offsets = [0, 2], sizes = [8, 19], strides = [1, 1]} : vector<8x23xf32> to vector<8x19xf32>
    %163 = vector.extract_strided_slice %153 {offsets = [0, 3], sizes = [8, 19], strides = [1, 1]} : vector<8x23xf32> to vector<8x19xf32>
    %164 = vector.extract_strided_slice %153 {offsets = [0, 4], sizes = [8, 19], strides = [1, 1]} : vector<8x23xf32> to vector<8x19xf32>
    %165 = tpu.concatenate %160, %161, %162, %163, %164 in 0 : vector<8x19xf32>, vector<8x19xf32>, vector<8x19xf32>, vector<8x19xf32>, vector<8x19xf32> -> vector<40x19xf32>
    %166 = tpu.concatenate %159, %165 in 1 : vector<40x19xf32>, vector<40x19xf32> -> vector<40x38xf32>
    %c48 = arith.constant 48 : index
    %c0_49 = arith.constant 0 : index
    %167 = vector.load %arg2[%c48, %c0_49] : memref<96x80xf32, #tpu.memory_space<vmem>>, vector<16x40xf32>
    %cst_50 = arith.constant dense<0.000000e+00> : vector<16x38xf32>
    %168 = tpu.matmul %167, %166, %cst_50 {dimension_numbers = #tpu.dot_dimension_numbers<[1], [0], [0], [1], [0, 0, 1, 1], [], []>} : vector<16x40xf32>, vector<40x38xf32>, vector<16x38xf32> -> vector<16x38xf32>
    %169 = vector.extract_strided_slice %123 {offsets = [0, 0], sizes = [16, 19], strides = [1, 1]} : vector<16x23xf32> to vector<16x19xf32>
    %170 = vector.extract_strided_slice %123 {offsets = [0, 1], sizes = [16, 19], strides = [1, 1]} : vector<16x23xf32> to vector<16x19xf32>
    %171 = vector.extract_strided_slice %123 {offsets = [0, 2], sizes = [16, 19], strides = [1, 1]} : vector<16x23xf32> to vector<16x19xf32>
    %172 = vector.extract_strided_slice %123 {offsets = [0, 3], sizes = [16, 19], strides = [1, 1]} : vector<16x23xf32> to vector<16x19xf32>
    %173 = vector.extract_strided_slice %123 {offsets = [0, 4], sizes = [16, 19], strides = [1, 1]} : vector<16x23xf32> to vector<16x19xf32>
    %174 = tpu.concatenate %169, %170, %171, %172, %173 in 0 : vector<16x19xf32>, vector<16x19xf32>, vector<16x19xf32>, vector<16x19xf32>, vector<16x19xf32> -> vector<80x19xf32>
    %175 = vector.extract_strided_slice %149 {offsets = [0, 0], sizes = [16, 19], strides = [1, 1]} : vector<16x23xf32> to vector<16x19xf32>
    %176 = vector.extract_strided_slice %149 {offsets = [0, 1], sizes = [16, 19], strides = [1, 1]} : vector<16x23xf32> to vector<16x19xf32>
    %177 = vector.extract_strided_slice %149 {offsets = [0, 2], sizes = [16, 19], strides = [1, 1]} : vector<16x23xf32> to vector<16x19xf32>
    %178 = vector.extract_strided_slice %149 {offsets = [0, 3], sizes = [16, 19], strides = [1, 1]} : vector<16x23xf32> to vector<16x19xf32>
    %179 = vector.extract_strided_slice %149 {offsets = [0, 4], sizes = [16, 19], strides = [1, 1]} : vector<16x23xf32> to vector<16x19xf32>
    %180 = tpu.concatenate %175, %176, %177, %178, %179 in 0 : vector<16x19xf32>, vector<16x19xf32>, vector<16x19xf32>, vector<16x19xf32>, vector<16x19xf32> -> vector<80x19xf32>
    %181 = tpu.concatenate %174, %180 in 1 : vector<80x19xf32>, vector<80x19xf32> -> vector<80x38xf32>
    %c64 = arith.constant 64 : index
    %c0_51 = arith.constant 0 : index
    %182 = vector.load %arg2[%c64, %c0_51] : memref<96x80xf32, #tpu.memory_space<vmem>>, vector<16x80xf32>
    %cst_52 = arith.constant dense<0.000000e+00> : vector<16x38xf32>
    %183 = tpu.matmul %182, %181, %cst_52 {dimension_numbers = #tpu.dot_dimension_numbers<[1], [0], [0], [1], [0, 0, 1, 1], [], []>} : vector<16x80xf32>, vector<80x38xf32>, vector<16x38xf32> -> vector<16x38xf32>
    %184 = arith.addf %168, %183 : vector<16x38xf32>
    %c72 = arith.constant 72 : index
    %c0_53 = arith.constant 0 : index
    %185 = vector.load %arg3[%c72, %c0_53] : memref<120x1xf32, #tpu.memory_space<vmem>>, vector<16x1xf32>
    %c88 = arith.constant 88 : index
    %c0_54 = arith.constant 0 : index
    %186 = vector.load %arg3[%c88, %c0_54] : memref<120x1xf32, #tpu.memory_space<vmem>>, vector<16x1xf32>
    %c104 = arith.constant 104 : index
    %c0_55 = arith.constant 0 : index
    %187 = vector.load %arg3[%c104, %c0_55] : memref<120x1xf32, #tpu.memory_space<vmem>>, vector<16x1xf32>
    %c80 = arith.constant 80 : index
    %c0_56 = arith.constant 0 : index
    %188 = vector.load %arg2[%c80, %c0_56] : memref<96x80xf32, #tpu.memory_space<vmem>>, vector<16x16xf32>
    %189 = vector.broadcast %185 : vector<16x1xf32> to vector<16x38xf32>
    %190 = arith.addf %184, %189 : vector<16x38xf32>
    %191 = vector.extract_strided_slice %190 {offsets = [0, 0], sizes = [16, 19], strides = [1, 1]} : vector<16x38xf32> to vector<16x19xf32>
    %cst_57 = arith.constant dense<0.000000e+00> : vector<16xf32>
    %192 = vector.multi_reduction <add>, %191, %cst_57 [1] : vector<16x19xf32> to vector<16xf32>
    %193 = vector.shape_cast %192 : vector<16xf32> to vector<16x1xf32>
    %194 = arith.mulf %191, %191 : vector<16x19xf32>
    %cst_58 = arith.constant dense<0.000000e+00> : vector<16xf32>
    %195 = vector.multi_reduction <add>, %194, %cst_58 [1] : vector<16x19xf32> to vector<16xf32>
    %196 = vector.shape_cast %195 : vector<16xf32> to vector<16x1xf32>
    %197 = tpu.concatenate %193, %196 in 1 : vector<16x1xf32>, vector<16x1xf32> -> vector<16x2xf32>
    %cst_59 = arith.constant dense<0.000000e+00> : vector<16x2xf32>
    %198 = tpu.matmul %188, %197, %cst_59 {dimension_numbers = #tpu.dot_dimension_numbers<[1], [0], [0], [1], [0, 0, 1, 1], [], []>} : vector<16x16xf32>, vector<16x2xf32>, vector<16x2xf32> -> vector<16x2xf32>
    %199 = vector.extract_strided_slice %198 {offsets = [0, 0], sizes = [16, 1], strides = [1, 1]} : vector<16x2xf32> to vector<16x1xf32>
    %200 = vector.extract_strided_slice %198 {offsets = [0, 1], sizes = [16, 1], strides = [1, 1]} : vector<16x2xf32> to vector<16x1xf32>
    %201 = arith.mulf %199, %199 : vector<16x1xf32>
    %202 = arith.subf %200, %201 : vector<16x1xf32>
    %cst_60 = arith.constant 0.000000e+00 : f32
    %203 = vector.broadcast %cst_60 : f32 to vector<16x1xf32>
    %204 = arith.maximumf %202, %203 : vector<16x1xf32>
    %cst_61 = arith.constant 9.99999974E-6 : f32
    %205 = vector.broadcast %cst_61 : f32 to vector<16x1xf32>
    %206 = arith.addf %204, %205 : vector<16x1xf32>
    %207 = math.rsqrt %206 : vector<16x1xf32>
    %208 = vector.broadcast %199 : vector<16x1xf32> to vector<16x19xf32>
    %209 = arith.subf %191, %208 : vector<16x19xf32>
    %210 = arith.mulf %207, %186 : vector<16x1xf32>
    %211 = vector.broadcast %210 : vector<16x1xf32> to vector<16x19xf32>
    %212 = arith.mulf %209, %211 : vector<16x19xf32>
    %213 = vector.broadcast %187 : vector<16x1xf32> to vector<16x19xf32>
    %214 = arith.addf %212, %213 : vector<16x19xf32>
    %cst_62 = arith.constant 0.000000e+00 : f32
    %215 = vector.broadcast %cst_62 : f32 to vector<16x19xf32>
    %216 = arith.maximumf %214, %215 : vector<16x19xf32>
    %217 = vector.extract_strided_slice %190 {offsets = [0, 19], sizes = [16, 19], strides = [1, 1]} : vector<16x38xf32> to vector<16x19xf32>
    %cst_63 = arith.constant dense<0.000000e+00> : vector<16xf32>
    %218 = vector.multi_reduction <add>, %217, %cst_63 [1] : vector<16x19xf32> to vector<16xf32>
    %219 = vector.shape_cast %218 : vector<16xf32> to vector<16x1xf32>
    %220 = arith.mulf %217, %217 : vector<16x19xf32>
    %cst_64 = arith.constant dense<0.000000e+00> : vector<16xf32>
    %221 = vector.multi_reduction <add>, %220, %cst_64 [1] : vector<16x19xf32> to vector<16xf32>
    %222 = vector.shape_cast %221 : vector<16xf32> to vector<16x1xf32>
    %223 = tpu.concatenate %219, %222 in 1 : vector<16x1xf32>, vector<16x1xf32> -> vector<16x2xf32>
    %cst_65 = arith.constant dense<0.000000e+00> : vector<16x2xf32>
    %224 = tpu.matmul %188, %223, %cst_65 {dimension_numbers = #tpu.dot_dimension_numbers<[1], [0], [0], [1], [0, 0, 1, 1], [], []>} : vector<16x16xf32>, vector<16x2xf32>, vector<16x2xf32> -> vector<16x2xf32>
    %225 = vector.extract_strided_slice %224 {offsets = [0, 0], sizes = [16, 1], strides = [1, 1]} : vector<16x2xf32> to vector<16x1xf32>
    %226 = vector.extract_strided_slice %224 {offsets = [0, 1], sizes = [16, 1], strides = [1, 1]} : vector<16x2xf32> to vector<16x1xf32>
    %227 = arith.mulf %225, %225 : vector<16x1xf32>
    %228 = arith.subf %226, %227 : vector<16x1xf32>
    %cst_66 = arith.constant 0.000000e+00 : f32
    %229 = vector.broadcast %cst_66 : f32 to vector<16x1xf32>
    %230 = arith.maximumf %228, %229 : vector<16x1xf32>
    %cst_67 = arith.constant 9.99999974E-6 : f32
    %231 = vector.broadcast %cst_67 : f32 to vector<16x1xf32>
    %232 = arith.addf %230, %231 : vector<16x1xf32>
    %233 = math.rsqrt %232 : vector<16x1xf32>
    %234 = vector.broadcast %225 : vector<16x1xf32> to vector<16x19xf32>
    %235 = arith.subf %217, %234 : vector<16x19xf32>
    %236 = arith.mulf %233, %186 : vector<16x1xf32>
    %237 = vector.broadcast %236 : vector<16x1xf32> to vector<16x19xf32>
    %238 = arith.mulf %235, %237 : vector<16x19xf32>
    %239 = vector.broadcast %187 : vector<16x1xf32> to vector<16x19xf32>
    %240 = arith.addf %238, %239 : vector<16x19xf32>
    %cst_68 = arith.constant 0.000000e+00 : f32
    %241 = vector.broadcast %cst_68 : f32 to vector<16x19xf32>
    %242 = arith.maximumf %240, %241 : vector<16x19xf32>
    %c0_69 = arith.constant 0 : index
    %c0_70 = arith.constant 0 : index
    %c0_71 = arith.constant 0 : index
    %243 = vector.load %arg4[%c0_69, %c0_70, %c0_71] : memref<2x16x19xf32, #tpu.memory_space<vmem>>, vector<1x16x19xf32>
    %244 = vector.shape_cast %243 : vector<1x16x19xf32> to vector<16x19xf32>
    %245 = vector.shape_cast %216 : vector<16x19xf32> to vector<1x16x19xf32>
    tpu.vector_store %arg4[%c0_69, %c0_70, %c0_71], %245 {strides = array<i32>} : memref<2x16x19xf32, #tpu.memory_space<vmem>>, vector<1x16x19xf32>,
    %c1_72 = arith.constant 1 : index
    %c0_73 = arith.constant 0 : index
    %c0_74 = arith.constant 0 : index
    %246 = vector.load %arg4[%c1_72, %c0_73, %c0_74] : memref<2x16x19xf32, #tpu.memory_space<vmem>>, vector<1x16x19xf32>
    %247 = vector.shape_cast %246 : vector<1x16x19xf32> to vector<16x19xf32>
    %248 = vector.shape_cast %242 : vector<16x19xf32> to vector<1x16x19xf32>
    tpu.vector_store %arg4[%c1_72, %c0_73, %c0_74], %248 {strides = array<i32>} : memref<2x16x19xf32, #tpu.memory_space<vmem>>, vector<1x16x19xf32>,
    return
  }
}

</mosaic_0001>

<llo_original>
// kernel: tpu_custom_call.1
$region0: #{tpu_custom_call.1}
  #allocation0 [shape = 'u32[]', space=smem, size = 0x4, offset = 0x4, fixed_abs, tag = 'smem constant byte address 0x4 - core index']
  #allocation1 [shape = 'u32[144,128]{1,0:T(1,128)}', space=vmem, size = 0x12000, scoped, tag = 'internal scratch']
  %s0 = inlined_call_operand.vmem [shape: f32[2,8,31], index: 0, kind: input, shape index: {}]
  %s1 = inlined_call_operand.vmem [shape: f32[2,8,23], index: 1, kind: input, shape index: {}]
  %s2 = inlined_call_operand.vmem [shape: f32[96,80], index: 2, kind: input, shape index: {}]
  %s3 = inlined_call_operand.vmem [shape: f32[120,1], index: 3, kind: input, shape index: {}]
  %s4 = inlined_call_operand.hbm [shape: f32[2,16,19], index: 4, kind: output, shape index: {}]
  %s5 = sld [smem:[#allocation0]]
  $region26: #{tpu_custom_call.1} parent=0
    _
  %s7 = ssub.s32 1, %s5
  %s8 = scalar_select 0, %s7, %s5
  $region1: #{tpu_custom_call.1} parent=0
    #allocation2 [shape = 'u8[16384]{0}', space=vmem, size = 0x4000, scoped, tag = 'output window, operand 0, single buffered']
    #allocation3 [shape = 's32[1]{0}', space=sflag, size = 0x4, scoped, tag = 'scoped memory for tpu_custom_call.1']
    %9 = vsyncpa [#allocation3], 0
    // Predicated region
    $region2: #{tpu_custom_call.1} parent=1 // pred_check
      _
    $region3: #{tpu_custom_call.1} parent=1 // pred_check_branch
      %11 = sbr.rel (0) target = $region5
    $region4: #{tpu_custom_call.1} parent=1 // pred_region
      _
    $region5: #{tpu_custom_call.1} parent=1 // pred_fallthru
      _
    // Predicated region
    $region6: #{tpu_custom_call.1} parent=1 // pred_check
      _
    $region7: #{tpu_custom_call.1} parent=1 // pred_check_branch
      %13 = sbr.rel (0) target = $region9
    $region8: #{tpu_custom_call.1} parent=1 // pred_region
      _
    $region9: #{tpu_custom_call.1} parent=1 // pred_fallthru
      _
    // Predicated region
    $region10: #{tpu_custom_call.1} parent=1 // pred_check
      _
    $region11: #{tpu_custom_call.1} parent=1 // pred_check_branch
      %15 = sbr.rel (0) target = $region13
    $region12: #{tpu_custom_call.1} parent=1 // pred_region
      _
    $region13: #{tpu_custom_call.1} parent=1 // pred_fallthru
      _
    // Predicated region
    $region14: #{tpu_custom_call.1} parent=1 // pred_check
      _
    $region15: #{tpu_custom_call.1} parent=1 // pred_check_branch
      %17 = sbr.rel (0) target = $region17
    $region16: #{tpu_custom_call.1} parent=1 // pred_region
      _
    $region17: #{tpu_custom_call.1} parent=1 // pred_fallthru
      _
    %v18 = vld [vmem:[%s0] sm:$0xff]
    %s19 = scalar_lea.vmem %s0, 8
    %v20 = vld [vmem:[%s19] sm:$0xff]
    %22 = vrot.lane.b32.xlu0 %v18, 127
    %v23 = vpop.permute.xlu0 %22
    %25 = vrot.lane.b32.xlu0 %v18, 126
    %v26 = vpop.permute.xlu0 %25
    %28 = vrot.lane.b32.xlu0 %v18, 125
    %v29 = vpop.permute.xlu0 %28
    %31 = vrot.lane.b32.xlu0 %v18, 124
    %v32 = vpop.permute.xlu0 %31
    %35 = vrot.lane.b32.xlu0 %v20, 127
    %v36 = vpop.permute.xlu0 %35
    %37 = vrot.lane.b32.xlu0 %v20, 126
    %v38 = vpop.permute.xlu0 %37
    %39 = vrot.lane.b32.xlu0 %v20, 125
    %v40 = vpop.permute.xlu0 %39
    %41 = vrot.lane.b32.xlu0 %v20, 124
    %v42 = vpop.permute.xlu0 %41
    %43 = vrot.lane.b32.xlu0 %v20, 27
    %v44 = vpop.permute.xlu0 %43
    %45 = vrot.lane.b32.xlu0 %v36, 27
    %v46 = vpop.permute.xlu0 %45
    %47 = vrot.lane.b32.xlu0 %v38, 27
    %v48 = vpop.permute.xlu0 %47
    %49 = vrot.lane.b32.xlu0 %v40, 27
    %v50 = vpop.permute.xlu0 %49
    %51 = vrot.lane.b32.xlu0 %v42, 27
    %v52 = vpop.permute.xlu0 %51
    %vm58 = vcmask 220160
    %v59 = vsel %vm58, %v18, %v44
    %v60 = vsel %vm58, %v23, %v46
    %v61 = vsel %vm58, %v26, %v48
    %v62 = vsel %vm58, %v29, %v50
    %v63 = vsel %vm58, %v32, %v52
    %v64 = vld [vmem:[%s2] sm:$0xff]
    %v65 = vld [vmem:[%s3] sm:$0xff]
    %v66 = vld [vmem:[%s3 + $0x8] sm:$0xff]
    %v67 = vld [vmem:[%s3 + $0x10] sm:$0xff]
    %v68 = vld [vmem:[%s2 + $0x8] sm:$0xff]
    %70 = vset.pattern.permute.xlu0 0
    %71 = vperm.xlu0 %70, %v65
    %v72 = vpop.permute.xlu0 %71
    %vm74 = vcmask 326656
    %v76 = vsel %vm74, %v64, 0
    %78 = vmatprep.subr.mxu0 0.0
    %79 = vmatpush1.msra.mxu0 %v59
    %80 = vmatprep.subr.mxu0 0.0
    %81 = vmatpush1.msra.mxu0 %v60
    %82 = vmatprep.subr.mxu0 0.0
    %83 = vmatpush1.msra.mxu0 %v61
    %84 = vmatprep.subr.mxu0 0.0
    %85 = vmatpush1.msra.mxu0 %v62
    %86 = vmatprep.subr.mxu0 0.0
    %87 = vmatpush1.msra.mxu0 %v63
    %88 = vmatprep.subr.mxu0 0.0
    %89 = vmatpush1.msra.mxu0 0.0
    %90 = vmatprep.subr.mxu0 0.0
    %91 = vmatpush1.msra.mxu0 0.0
    %92 = vmatprep.subr.mxu0 0.0
    %93 = vmatpush1.msra.mxu0 0.0
    %94 = vmatprep.subr.mxu0 0.0
    %95 = vmatpush1.msra.mxu0 0.0
    %96 = vmatprep.subr.mxu0 0.0
    %97 = vmatpush1.msra.mxu0 0.0
    %98 = vmatprep.subr.mxu0 0.0
    %99 = vmatpush1.msra.mxu0 0.0
    %100 = vmatprep.subr.mxu0 0.0
    %101 = vmatpush1.msra.mxu0 0.0
    %102 = vmatprep.subr.mxu0 0.0
    %103 = vmatpush1.msra.mxu0 0.0
    %104 = vmatprep.subr.mxu0 0.0
    %105 = vmatpush1.msra.mxu0 0.0
    %106 = vmatprep.subr.mxu0 0.0
    %107 = vmatpush1.msra.mxu0 0.0
    %108 = vmatprep.subr.mxu0 0.0
    %109 = vmatpush1.msra.mxu0 0.0
    %110 = vmatprep.subr.mxu0 0.0
    %111 = vmatpush1.msra.mxu0 0.0
    %112 = vmatprep.subr.mxu0 0.0
    %113 = vmatpush1.msra.mxu0 0.0
    %114 = vmatprep.subr.mxu0 0.0
    %115 = vmatpush1.msra.mxu0 0.0
    %116 = vmatprep.subr.mxu0 0.0
    %117 = vmatpush1.msra.mxu0 0.0
    %118 = vmatprep.subr.mxu0 0.0
    %119 = vmatpush1.msra.mxu0 0.0
    %120 = vmatprep.subr.mxu0 0.0
    %121 = vmatpush1.msra.mxu0 0.0
    %122 = vmatprep.subr.mxu0 0.0
    %123 = vmatpush1.msra.mxu0 0.0
    %124 = vmatprep.subr.mxu0 0.0
    %125 = vmatpush1.msra.mxu0 0.0
    %126 = vmatprep.subr.mxu0 0.0
    %127 = vmatpush1.msra.mxu0 0.0
    %128 = vmatprep.subr.mxu0 0.0
    %129 = vmatpush1.msra.mxu0 0.0
    %130 = vmatprep.subr.mxu0 0.0
    %131 = vmatpush1.msra.mxu0 0.0
    %132 = vmatprep.subr.mxu0 0.0
    %133 = vmatpush1.msra.mxu0 0.0
    %134 = vmatprep.subr.mxu0 0.0
    %135 = vmatpush1.msra.mxu0 0.0
    %136 = vmatprep.subr.mxu0 0.0
    %137 = vmatpush1.msra.mxu0 0.0
    %138 = vmatprep.subr.mxu0 0.0
    %139 = vmatpush1.msra.mxu0 0.0
    %140 = vmatprep.subr.mxu0 0.0
    %141 = vmatpush1.msra.mxu0 0.0
    %142 = vmatprep.mubr.f32.mxu0 0.0
    %143 = vmatmul.mubr.f32.gmra.mrb[0].mxu0 %v76
    %v144 = vpop.f32.mrb[0].mxu0
    %v145 = vadd.f32 %v72, %v144
    %v146 = vpop.f32.mrb[0].mxu0
    %147 = vdwg.mxu0
    %v148 = vsel %vm58, %v145, 0.0
    %149 = vadd.xlane.f32.xlu0 %v148
    %v150 = vpop.xlane.xlu0 %149
    %v151 = vmul.f32 %v145, %v145
    %v152 = vsel %vm58, %v151, 0.0
    %153 = vadd.xlane.f32.xlu0 %v152
    %v154 = vpop.xlane.xlu0 %153
    %vm155 = vcmask 7168
    %v156 = vsel %vm155, %v150, %v154
    %vm157 = vcmask 64512
    %v159 = vsel %vm157, %v68, 0
    %161 = vmatprep.subr.mxu0 0.0
    %162 = vmatpush1.msra.mxu0 %v156
    %163 = vmatprep.subr.mxu0 0.0
    %164 = vmatpush1.msra.mxu0 0.0
    %165 = vmatprep.subr.mxu0 0.0
    %166 = vmatpush1.msra.mxu0 0.0
    %167 = vmatprep.subr.mxu0 0.0
    %168 = vmatpush1.msra.mxu0 0.0
    %169 = vmatprep.subr.mxu0 0.0
    %170 = vmatpush1.msra.mxu0 0.0
    %171 = vmatprep.subr.mxu0 0.0
    %172 = vmatpush1.msra.mxu0 0.0
    %173 = vmatprep.subr.mxu0 0.0
    %174 = vmatpush1.msra.mxu0 0.0
    %175 = vmatprep.subr.mxu0 0.0
    %176 = vmatpush1.msra.mxu0 0.0
    %177 = vmatprep.subr.mxu0 0.0
    %178 = vmatpush1.msra.mxu0 0.0
    %179 = vmatprep.subr.mxu0 0.0
    %180 = vmatpush1.msra.mxu0 0.0
    %181 = vmatprep.subr.mxu0 0.0
    %182 = vmatpush1.msra.mxu0 0.0
    %183 = vmatprep.subr.mxu0 0.0
    %184 = vmatpush1.msra.mxu0 0.0
    %185 = vmatprep.subr.mxu0 0.0
    %186 = vmatpush1.msra.mxu0 0.0
    %187 = vmatprep.subr.mxu0 0.0
    %188 = vmatpush1.msra.mxu0 0.0
    %189 = vmatprep.subr.mxu0 0.0
    %190 = vmatpush1.msra.mxu0 0.0
    %191 = vmatprep.subr.mxu0 0.0
    %192 = vmatpush1.msra.mxu0 0.0
    %193 = vmatprep.subr.mxu0 0.0
    %194 = vmatpush1.msra.mxu0 0.0
    %195 = vmatprep.subr.mxu0 0.0
    %196 = vmatpush1.msra.mxu0 0.0
    %197 = vmatprep.subr.mxu0 0.0
    %198 = vmatpush1.msra.mxu0 0.0
    %199 = vmatprep.subr.mxu0 0.0
    %200 = vmatpush1.msra.mxu0 0.0
    %201 = vmatprep.subr.mxu0 0.0
    %202 = vmatpush1.msra.mxu0 0.0
    %203 = vmatprep.subr.mxu0 0.0
    %204 = vmatpush1.msra.mxu0 0.0
    %205 = vmatprep.subr.mxu0 0.0
    %206 = vmatpush1.msra.mxu0 0.0
    %207 = vmatprep.subr.mxu0 0.0
    %208 = vmatpush1.msra.mxu0 0.0
    %209 = vmatprep.subr.mxu0 0.0
    %210 = vmatpush1.msra.mxu0 0.0
    %211 = vmatprep.subr.mxu0 0.0
    %212 = vmatpush1.msra.mxu0 0.0
    %213 = vmatprep.subr.mxu0 0.0
    %214 = vmatpush1.msra.mxu0 0.0
    %215 = vmatprep.subr.mxu0 0.0
    %216 = vmatpush1.msra.mxu0 0.0
    %217 = vmatprep.subr.mxu0 0.0
    %218 = vmatpush1.msra.mxu0 0.0
    %219 = vmatprep.subr.mxu0 0.0
    %220 = vmatpush1.msra.mxu0 0.0
    %221 = vmatprep.subr.mxu0 0.0
    %222 = vmatpush1.msra.mxu0 0.0
    %223 = vmatprep.subr.mxu0 0.0
    %224 = vmatpush1.msra.mxu0 0.0
    %225 = vmatprep.mubr.f32.mxu0 0.0
    %226 = vmatmul.mubr.f32.gmra.mrb[0].mxu0 %v159
    %v227 = vpop.f32.mrb[0].mxu0
    %v228 = vadd.f32 0.0, %v227
    %v229 = vpop.f32.mrb[0].mxu0
    %230 = vdwg.mxu0
    %v231 = vmul.f32 %v228, %v228
    %233 = vrot.lane.b32.xlu0 %v231, 1
    %v234 = vpop.permute.xlu0 %233
    %v236 = vsub.f32 %v228, %v234
    %v237 = vmax.f32 %v236, 0.0
    %v238 = vadd.f32 %v237, 1e-05
    %v239 = vrsqrt.pop %v238
    %241 = vset.pattern.permute.xlu0 0
    %242 = vperm.xlu0 %241, %v228
    %v243 = vpop.permute.xlu0 %242
    %v245 = vsub.f32 %v145, %v243
    %247 = vrot.lane.b32.xlu0 %v66, 1
    %v248 = vpop.permute.xlu0 %247
    %v250 = vmul.f32 %v239, %v248
    %252 = vset.pattern.permute.xlu0 1
    %253 = vperm.xlu0 %252, %v250
    %v254 = vpop.permute.xlu0 %253
    %v256 = vmul.f32 %v245, %v254
    %258 = vset.pattern.permute.xlu0 0
    %259 = vperm.xlu0 %258, %v67
    %v260 = vpop.permute.xlu0 %259
    %v262 = vadd.f32 %v256, %v260
    %v263 = vmax.f32 %v262, 0.0
    %265 = vrot.lane.b32.xlu0 %v145, 101
    %v266 = vpop.permute.xlu0 %265
    %v268 = vsel %vm58, %v266, 0.0
    %269 = vadd.xlane.f32.xlu0 %v268
    %v270 = vpop.xlane.xlu0 %269
    %272 = vrot.lane.b32.xlu0 %v151, 101
    %v273 = vpop.permute.xlu0 %272
    %v275 = vsel %vm58, %v273, 0.0
    %276 = vadd.xlane.f32.xlu0 %v275
    %v277 = vpop.xlane.xlu0 %276
    %v278 = vsel %vm155, %v270, %v277
    %279 = vmatprep.subr.mxu0 0.0
    %280 = vmatpush1.msra.mxu0 %v278
    %281 = vmatprep.subr.mxu0 0.0
    %282 = vmatpush1.msra.mxu0 0.0
    %283 = vmatprep.subr.mxu0 0.0
    %284 = vmatpush1.msra.mxu0 0.0
    %285 = vmatprep.subr.mxu0 0.0
    %286 = vmatpush1.msra.mxu0 0.0
    %287 = vmatprep.subr.mxu0 0.0
    %288 = vmatpush1.msra.mxu0 0.0
    %289 = vmatprep.subr.mxu0 0.0
    %290 = vmatpush1.msra.mxu0 0.0
    %291 = vmatprep.subr.mxu0 0.0
    %292 = vmatpush1.msra.mxu0 0.0
    %293 = vmatprep.subr.mxu0 0.0
    %294 = vmatpush1.msra.mxu0 0.0
    %295 = vmatprep.subr.mxu0 0.0
    %296 = vmatpush1.msra.mxu0 0.0
    %297 = vmatprep.subr.mxu0 0.0
    %298 = vmatpush1.msra.mxu0 0.0
    %299 = vmatprep.subr.mxu0 0.0
    %300 = vmatpush1.msra.mxu0 0.0
    %301 = vmatprep.subr.mxu0 0.0
    %302 = vmatpush1.msra.mxu0 0.0
    %303 = vmatprep.subr.mxu0 0.0
    %304 = vmatpush1.msra.mxu0 0.0
    %305 = vmatprep.subr.mxu0 0.0
    %306 = vmatpush1.msra.mxu0 0.0
    %307 = vmatprep.subr.mxu0 0.0
    %308 = vmatpush1.msra.mxu0 0.0
    %309 = vmatprep.subr.mxu0 0.0
    %310 = vmatpush1.msra.mxu0 0.0
    %311 = vmatprep.subr.mxu0 0.0
    %312 = vmatpush1.msra.mxu0 0.0
    %313 = vmatprep.subr.mxu0 0.0
    %314 = vmatpush1.msra.mxu0 0.0
    %315 = vmatprep.subr.mxu0 0.0
    %316 = vmatpush1.msra.mxu0 0.0
    %317 = vmatprep.subr.mxu0 0.0
    %318 = vmatpush1.msra.mxu0 0.0
    %319 = vmatprep.subr.mxu0 0.0
    %320 = vmatpush1.msra.mxu0 0.0
    %321 = vmatprep.subr.mxu0 0.0
    %322 = vmatpush1.msra.mxu0 0.0
    %323 = vmatprep.subr.mxu0 0.0
    %324 = vmatpush1.msra.mxu0 0.0
    %325 = vmatprep.subr.mxu0 0.0
    %326 = vmatpush1.msra.mxu0 0.0
    %327 = vmatprep.subr.mxu0 0.0
    %328 = vmatpush1.msra.mxu0 0.0
    %329 = vmatprep.subr.mxu0 0.0
    %330 = vmatpush1.msra.mxu0 0.0
    %331 = vmatprep.subr.mxu0 0.0
    %332 = vmatpush1.msra.mxu0 0.0
    %333 = vmatprep.subr.mxu0 0.0
    %334 = vmatpush1.msra.mxu0 0.0
    %335 = vmatprep.subr.mxu0 0.0
    %336 = vmatpush1.msra.mxu0 0.0
    %337 = vmatprep.subr.mxu0 0.0
    %338 = vmatpush1.msra.mxu0 0.0
    %339 = vmatprep.subr.mxu0 0.0
    %340 = vmatpush1.msra.mxu0 0.0
    %341 = vmatprep.subr.mxu0 0.0
    %342 = vmatpush1.msra.mxu0 0.0
    %343 = vmatprep.mubr.f32.mxu0 0.0
    %344 = vmatmul.mubr.f32.gmra.mrb[0].mxu0 %v159
    %v345 = vpop.f32.mrb[0].mxu0
    %v346 = vadd.f32 0.0, %v345
    %v347 = vpop.f32.mrb[0].mxu0
    %348 = vdwg.mxu0
    %v349 = vmul.f32 %v346, %v346
    %351 = vrot.lane.b32.xlu0 %v349, 1
    %v352 = vpop.permute.xlu0 %351
    %v354 = vsub.f32 %v346, %v352
    %v355 = vmax.f32 %v354, 0.0
    %v356 = vadd.f32 %v355, 1e-05
    %v357 = vrsqrt.pop %v356
    %359 = vset.pattern.permute.xlu0 0
    %360 = vperm.xlu0 %359, %v346
    %v361 = vpop.permute.xlu0 %360
    %v363 = vsub.f32 %v145, %v361
    %v364 = vmul.f32 %v357, %v248
    %366 = vset.pattern.permute.xlu0 1
    %367 = vperm.xlu0 %366, %v364
    %v368 = vpop.permute.xlu0 %367
    %v370 = vmul.f32 %v363, %v368
    %v371 = vadd.f32 %v370, %v260
    %v372 = vmax.f32 %v371, 0.0
    %374 = vrot.lane.b32.xlu0 %v263, 127
    %v375 = vpop.permute.xlu0 %374
    %377 = vrot.lane.b32.xlu0 %v263, 126
    %v378 = vpop.permute.xlu0 %377
    %380 = vrot.lane.b32.xlu0 %v263, 125
    %v381 = vpop.permute.xlu0 %380
    %383 = vrot.lane.b32.xlu0 %v263, 124
    %v384 = vpop.permute.xlu0 %383
    %387 = vrot.lane.b32.xlu0 %v372, 127
    %v388 = vpop.permute.xlu0 %387
    %389 = vrot.lane.b32.xlu0 %v372, 126
    %v390 = vpop.permute.xlu0 %389
    %391 = vrot.lane.b32.xlu0 %v372, 125
    %v392 = vpop.permute.xlu0 %391
    %393 = vrot.lane.b32.xlu0 %v372, 124
    %v394 = vpop.permute.xlu0 %393
    %395 = vrot.lane.b32.xlu0 %v388, 124
    %v396 = vpop.permute.xlu0 %395
    %397 = vrot.lane.b32.xlu0 %v390, 124
    %v398 = vpop.permute.xlu0 %397
    %399 = vrot.lane.b32.xlu0 %v392, 124
    %v400 = vpop.permute.xlu0 %399
    %401 = vrot.lane.b32.xlu0 %v394, 124
    %v402 = vpop.permute.xlu0 %401
    %vm408 = vcmask 187392
    %v409 = vsel %vm408, %v263, %v394
    %v410 = vsel %vm408, %v375, %v396
    %v411 = vsel %vm408, %v378, %v398
    %v412 = vsel %vm408, %v381, %v400
    %v413 = vsel %vm408, %v384, %v402
    %v414 = vld [vmem:[%s2 + $0x10] sm:$0xff]
    %v415 = vld [vmem:[%s2 + $0x18] sm:$0xff]
    %v416 = vld [vmem:[%s3 + $0x18] sm:$0xff]
    %v417 = vld [vmem:[%s3 + $0x20] sm:$0xff]
    %v418 = vld [vmem:[%s3 + $0x28] sm:$0xff]
    %v419 = vld [vmem:[%s3 + $0x30] sm:$0xff]
    %v420 = vld [vmem:[%s3 + $0x38] sm:$0xff]
    %v421 = vld [vmem:[%s3 + $0x40] sm:$0xff]
    %v422 = vld [vmem:[%s2 + $0x20] sm:$0xff]
    %v423 = vld [vmem:[%s2 + $0x28] sm:$0xff]
    %425 = vset.pattern.permute.xlu0 0
    %426 = vperm.xlu0 %425, %v416
    %v427 = vpop.permute.xlu0 %426
    %430 = vset.pattern.permute.xlu0 0
    %431 = vperm.xlu0 %430, %v417
    %v432 = vpop.permute.xlu0 %431
    %v435 = vsel %vm74, %v414, 0
    %v438 = vsel %vm74, %v415, 0
    %440 = vmatprep.subr.mxu0 0.0
    %441 = vmatpush1.msra.mxu0 %v409
    %442 = vmatprep.subr.mxu0 0.0
    %443 = vmatpush1.msra.mxu0 %v410
    %444 = vmatprep.subr.mxu0 0.0
    %445 = vmatpush1.msra.mxu0 %v411
    %446 = vmatprep.subr.mxu0 0.0
    %447 = vmatpush1.msra.mxu0 %v412
    %448 = vmatprep.subr.mxu0 0.0
    %449 = vmatpush1.msra.mxu0 %v413
    %450 = vmatprep.subr.mxu0 0.0
    %451 = vmatpush1.msra.mxu0 0.0
    %452 = vmatprep.subr.mxu0 0.0
    %453 = vmatpush1.msra.mxu0 0.0
    %454 = vmatprep.subr.mxu0 0.0
    %455 = vmatpush1.msra.mxu0 0.0
    %456 = vmatprep.subr.mxu0 0.0
    %457 = vmatpush1.msra.mxu0 0.0
    %458 = vmatprep.subr.mxu0 0.0
    %459 = vmatpush1.msra.mxu0 0.0
    %460 = vmatprep.subr.mxu0 0.0
    %461 = vmatpush1.msra.mxu0 0.0
    %462 = vmatprep.subr.mxu0 0.0
    %463 = vmatpush1.msra.mxu0 0.0
    %464 = vmatprep.subr.mxu0 0.0
    %465 = vmatpush1.msra.mxu0 0.0
    %466 = vmatprep.subr.mxu0 0.0
    %467 = vmatpush1.msra.mxu0 0.0
    %468 = vmatprep.subr.mxu0 0.0
    %469 = vmatpush1.msra.mxu0 0.0
    %470 = vmatprep.subr.mxu0 0.0
    %471 = vmatpush1.msra.mxu0 0.0
    %472 = vmatprep.subr.mxu0 0.0
    %473 = vmatpush1.msra.mxu0 0.0
    %474 = vmatprep.subr.mxu0 0.0
    %475 = vmatpush1.msra.mxu0 0.0
    %476 = vmatprep.subr.mxu0 0.0
    %477 = vmatpush1.msra.mxu0 0.0
    %478 = vmatprep.subr.mxu0 0.0
    %479 = vmatpush1.msra.mxu0 0.0
    %480 = vmatprep.subr.mxu0 0.0
    %481 = vmatpush1.msra.mxu0 0.0
    %482 = vmatprep.subr.mxu0 0.0
    %483 = vmatpush1.msra.mxu0 0.0
    %484 = vmatprep.subr.mxu0 0.0
    %485 = vmatpush1.msra.mxu0 0.0
    %486 = vmatprep.subr.mxu0 0.0
    %487 = vmatpush1.msra.mxu0 0.0
    %488 = vmatprep.subr.mxu0 0.0
    %489 = vmatpush1.msra.mxu0 0.0
    %490 = vmatprep.subr.mxu0 0.0
    %491 = vmatpush1.msra.mxu0 0.0
    %492 = vmatprep.subr.mxu0 0.0
    %493 = vmatpush1.msra.mxu0 0.0
    %494 = vmatprep.subr.mxu0 0.0
    %495 = vmatpush1.msra.mxu0 0.0
    %496 = vmatprep.subr.mxu0 0.0
    %497 = vmatpush1.msra.mxu0 0.0
    %498 = vmatprep.subr.mxu0 0.0
    %499 = vmatpush1.msra.mxu0 0.0
    %500 = vmatprep.subr.mxu0 0.0
    %501 = vmatpush1.msra.mxu0 0.0
    %502 = vmatprep.subr.mxu0 0.0
    %503 = vmatpush1.msra.mxu0 0.0
    %504 = vmatprep.mubr.f32.mxu0 0.0
    %505 = vmatmul.mubr.f32.gmra.mrb[0].mxu0 %v435
    %v506 = vpop.f32.mrb[0].mxu0
    %v507 = vadd.f32 %v427, %v506
    %v508 = vpop.f32.mrb[0].mxu0
    %509 = vmatprep.mubr.f32.mxu0 0.0
    %510 = vmatmul.mubr.f32.gmra.mrb[0].mxu0 %v438
    %v511 = vpop.f32.mrb[0].mxu0
    %v512 = vadd.f32 %v432, %v511
    %v513 = vpop.f32.mrb[0].mxu0
    %514 = vdwg.mxu0
    %v515 = vsel %vm408, %v507, 0.0
    %516 = vadd.xlane.f32.xlu0 %v515
    %v517 = vpop.xlane.xlu0 %516
    %v518 = vsel %vm408, %v512, 0.0
    %519 = vadd.xlane.f32.xlu0 %v518
    %v520 = vpop.xlane.xlu0 %519
    %v521 = vmul.f32 %v507, %v507
    %v522 = vmul.f32 %v512, %v512
    %v523 = vsel %vm408, %v521, 0.0
    %524 = vadd.xlane.f32.xlu0 %v523
    %v525 = vpop.xlane.xlu0 %524
    %v526 = vsel %vm408, %v522, 0.0
    %527 = vadd.xlane.f32.xlu0 %v526
    %v528 = vpop.xlane.xlu0 %527
    %v529 = vsel %vm155, %v517, %v525
    %v530 = vsel %vm155, %v520, %v528
    %vm531 = vcmask 130048
    %v533 = vsel %vm531, %v422, 0
    %v536 = vsel %vm531, %v423, 0
    %538 = vmatprep.subr.mxu0 0.0
    %539 = vmatpush1.msra.mxu0 %v529
    %540 = vmatprep.subr.mxu0 0.0
    %541 = vmatpush1.msra.mxu0 %v530
    %542 = vmatprep.subr.mxu0 0.0
    %543 = vmatpush1.msra.mxu0 0.0
    %544 = vmatprep.subr.mxu0 0.0
    %545 = vmatpush1.msra.mxu0 0.0
    %546 = vmatprep.subr.mxu0 0.0
    %547 = vmatpush1.msra.mxu0 0.0
    %548 = vmatprep.subr.mxu0 0.0
    %549 = vmatpush1.msra.mxu0 0.0
    %550 = vmatprep.subr.mxu0 0.0
    %551 = vmatpush1.msra.mxu0 0.0
    %552 = vmatprep.subr.mxu0 0.0
    %553 = vmatpush1.msra.mxu0 0.0
    %554 = vmatprep.subr.mxu0 0.0
    %555 = vmatpush1.msra.mxu0 0.0
    %556 = vmatprep.subr.mxu0 0.0
    %557 = vmatpush1.msra.mxu0 0.0
    %558 = vmatprep.subr.mxu0 0.0
    %559 = vmatpush1.msra.mxu0 0.0
    %560 = vmatprep.subr.mxu0 0.0
    %561 = vmatpush1.msra.mxu0 0.0
    %562 = vmatprep.subr.mxu0 0.0
    %563 = vmatpush1.msra.mxu0 0.0
    %564 = vmatprep.subr.mxu0 0.0
    %565 = vmatpush1.msra.mxu0 0.0
    %566 = vmatprep.subr.mxu0 0.0
    %567 = vmatpush1.msra.mxu0 0.0
    %568 = vmatprep.subr.mxu0 0.0
    %569 = vmatpush1.msra.mxu0 0.0
    %570 = vmatprep.subr.mxu0 0.0
    %571 = vmatpush1.msra.mxu0 0.0
    %572 = vmatprep.subr.mxu0 0.0
    %573 = vmatpush1.msra.mxu0 0.0
    %574 = vmatprep.subr.mxu0 0.0
    %575 = vmatpush1.msra.mxu0 0.0
    %576 = vmatprep.subr.mxu0 0.0
    %577 = vmatpush1.msra.mxu0 0.0
    %578 = vmatprep.subr.mxu0 0.0
    %579 = vmatpush1.msra.mxu0 0.0
    %580 = vmatprep.subr.mxu0 0.0
    %581 = vmatpush1.msra.mxu0 0.0
    %582 = vmatprep.subr.mxu0 0.0
    %583 = vmatpush1.msra.mxu0 0.0
    %584 = vmatprep.subr.mxu0 0.0
    %585 = vmatpush1.msra.mxu0 0.0
    %586 = vmatprep.subr.mxu0 0.0
    %587 = vmatpush1.msra.mxu0 0.0
    %588 = vmatprep.subr.mxu0 0.0
    %589 = vmatpush1.msra.mxu0 0.0
    %590 = vmatprep.subr.mxu0 0.0
    %591 = vmatpush1.msra.mxu0 0.0
    %592 = vmatprep.subr.mxu0 0.0
    %593 = vmatpush1.msra.mxu0 0.0
    %594 = vmatprep.subr.mxu0 0.0
    %595 = vmatpush1.msra.mxu0 0.0
    %596 = vmatprep.subr.mxu0 0.0
    %597 = vmatpush1.msra.mxu0 0.0
    %598 = vmatprep.subr.mxu0 0.0
    %599 = vmatpush1.msra.mxu0 0.0
    %600 = vmatprep.subr.mxu0 0.0
    %601 = vmatpush1.msra.mxu0 0.0
    %602 = vmatprep.mubr.f32.mxu0 0.0
    %603 = vmatmul.mubr.f32.gmra.mrb[0].mxu0 %v533
    %v604 = vpop.f32.mrb[0].mxu0
    %v605 = vadd.f32 0.0, %v604
    %v606 = vpop.f32.mrb[0].mxu0
    %607 = vmatprep.mubr.f32.mxu0 0.0
    %608 = vmatmul.mubr.f32.gmra.mrb[0].mxu0 %v536
    %v609 = vpop.f32.mrb[0].mxu0
    %v610 = vadd.f32 0.0, %v609
    %v611 = vpop.f32.mrb[0].mxu0
    %612 = vdwg.mxu0
    %v613 = vmul.f32 %v605, %v605
    %v614 = vmul.f32 %v610, %v610
    %617 = vrot.lane.b32.xlu0 %v613, 1
    %v618 = vpop.permute.xlu0 %617
    %619 = vrot.lane.b32.xlu0 %v614, 1
    %v620 = vpop.permute.xlu0 %619
    %v623 = vsub.f32 %v605, %v618
    %v624 = vsub.f32 %v610, %v620
    %v625 = vmax.f32 %v623, 0.0
    %v626 = vmax.f32 %v624, 0.0
    %v627 = vadd.f32 %v625, 1e-05
    %v628 = vadd.f32 %v626, 1e-05
    %v629 = vrsqrt.pop %v627
    %v630 = vrsqrt.pop %v628
    %632 = vset.pattern.permute.xlu0 0
    %633 = vperm.xlu0 %632, %v605
    %v634 = vpop.permute.xlu0 %633
    %637 = vset.pattern.permute.xlu0 0
    %638 = vperm.xlu0 %637, %v610
    %v639 = vpop.permute.xlu0 %638
    %v641 = vsub.f32 %v507, %v634
    %v642 = vsub.f32 %v512, %v639
    %645 = vrot.lane.b32.xlu0 %v418, 1
    %v646 = vpop.permute.xlu0 %645
    %647 = vrot.lane.b32.xlu0 %v419, 1
    %v648 = vpop.permute.xlu0 %647
    %v651 = vmul.f32 %v629, %v646
    %v652 = vmul.f32 %v630, %v648
    %654 = vset.pattern.permute.xlu0 1
    %655 = vperm.xlu0 %654, %v651
    %v656 = vpop.permute.xlu0 %655
    %659 = vset.pattern.permute.xlu0 1
    %660 = vperm.xlu0 %659, %v652
    %v661 = vpop.permute.xlu0 %660
    %v663 = vmul.f32 %v641, %v656
    %v664 = vmul.f32 %v642, %v661
    %666 = vset.pattern.permute.xlu0 0
    %667 = vperm.xlu0 %666, %v420
    %v668 = vpop.permute.xlu0 %667
    %671 = vset.pattern.permute.xlu0 0
    %672 = vperm.xlu0 %671, %v421
    %v673 = vpop.permute.xlu0 %672
    %v675 = vadd.f32 %v663, %v668
    %v676 = vadd.f32 %v664, %v673
    %v677 = vmax.f32 %v675, 0.0
    %v678 = vmax.f32 %v676, 0.0
    %681 = vrot.lane.b32.xlu0 %v507, 105
    %v682 = vpop.permute.xlu0 %681
    %683 = vrot.lane.b32.xlu0 %v512, 105
    %v684 = vpop.permute.xlu0 %683
    %v687 = vsel %vm408, %v682, 0.0
    %688 = vadd.xlane.f32.xlu0 %v687
    %v689 = vpop.xlane.xlu0 %688
    %v690 = vsel %vm408, %v684, 0.0
    %691 = vadd.xlane.f32.xlu0 %v690
    %v692 = vpop.xlane.xlu0 %691
    %695 = vrot.lane.b32.xlu0 %v521, 105
    %v696 = vpop.permute.xlu0 %695
    %697 = vrot.lane.b32.xlu0 %v522, 105
    %v698 = vpop.permute.xlu0 %697
    %v701 = vsel %vm408, %v696, 0.0
    %702 = vadd.xlane.f32.xlu0 %v701
    %v703 = vpop.xlane.xlu0 %702
    %v704 = vsel %vm408, %v698, 0.0
    %705 = vadd.xlane.f32.xlu0 %v704
    %v706 = vpop.xlane.xlu0 %705
    %v707 = vsel %vm155, %v689, %v703
    %v708 = vsel %vm155, %v692, %v706
    %709 = vmatprep.subr.mxu0 0.0
    %710 = vmatpush1.msra.mxu0 %v707
    %711 = vmatprep.subr.mxu0 0.0
    %712 = vmatpush1.msra.mxu0 %v708
    %713 = vmatprep.subr.mxu0 0.0
    %714 = vmatpush1.msra.mxu0 0.0
    %715 = vmatprep.subr.mxu0 0.0
    %716 = vmatpush1.msra.mxu0 0.0
    %717 = vmatprep.subr.mxu0 0.0
    %718 = vmatpush1.msra.mxu0 0.0
    %719 = vmatprep.subr.mxu0 0.0
    %720 = vmatpush1.msra.mxu0 0.0
    %721 = vmatprep.subr.mxu0 0.0
    %722 = vmatpush1.msra.mxu0 0.0
    %723 = vmatprep.subr.mxu0 0.0
    %724 = vmatpush1.msra.mxu0 0.0
    %725 = vmatprep.subr.mxu0 0.0
    %726 = vmatpush1.msra.mxu0 0.0
    %727 = vmatprep.subr.mxu0 0.0
    %728 = vmatpush1.msra.mxu0 0.0
    %729 = vmatprep.subr.mxu0 0.0
    %730 = vmatpush1.msra.mxu0 0.0
    %731 = vmatprep.subr.mxu0 0.0
    %732 = vmatpush1.msra.mxu0 0.0
    %733 = vmatprep.subr.mxu0 0.0
    %734 = vmatpush1.msra.mxu0 0.0
    %735 = vmatprep.subr.mxu0 0.0
    %736 = vmatpush1.msra.mxu0 0.0
    %737 = vmatprep.subr.mxu0 0.0
    %738 = vmatpush1.msra.mxu0 0.0
    %739 = vmatprep.subr.mxu0 0.0
    %740 = vmatpush1.msra.mxu0 0.0
    %741 = vmatprep.subr.mxu0 0.0
    %742 = vmatpush1.msra.mxu0 0.0
    %743 = vmatprep.subr.mxu0 0.0
    %744 = vmatpush1.msra.mxu0 0.0
    %745 = vmatprep.subr.mxu0 0.0
    %746 = vmatpush1.msra.mxu0 0.0
    %747 = vmatprep.subr.mxu0 0.0
    %748 = vmatpush1.msra.mxu0 0.0
    %749 = vmatprep.subr.mxu0 0.0
    %750 = vmatpush1.msra.mxu0 0.0
    %751 = vmatprep.subr.mxu0 0.0
    %752 = vmatpush1.msra.mxu0 0.0
    %753 = vmatprep.subr.mxu0 0.0
    %754 = vmatpush1.msra.mxu0 0.0
    %755 = vmatprep.subr.mxu0 0.0
    %756 = vmatpush1.msra.mxu0 0.0
    %757 = vmatprep.subr.mxu0 0.0
    %758 = vmatpush1.msra.mxu0 0.0
    %759 = vmatprep.subr.mxu0 0.0
    %760 = vmatpush1.msra.mxu0 0.0
    %761 = vmatprep.subr.mxu0 0.0
    %762 = vmatpush1.msra.mxu0 0.0
    %763 = vmatprep.subr.mxu0 0.0
    %764 = vmatpush1.msra.mxu0 0.0
    %765 = vmatprep.subr.mxu0 0.0
    %766 = vmatpush1.msra.mxu0 0.0
    %767 = vmatprep.subr.mxu0 0.0
    %768 = vmatpush1.msra.mxu0 0.0
    %769 = vmatprep.subr.mxu0 0.0
    %770 = vmatpush1.msra.mxu0 0.0
    %771 = vmatprep.subr.mxu0 0.0
    %772 = vmatpush1.msra.mxu0 0.0
    %773 = vmatprep.mubr.f32.mxu0 0.0
    %774 = vmatmul.mubr.f32.gmra.mrb[0].mxu0 %v533
    %v775 = vpop.f32.mrb[0].mxu0
    %v776 = vadd.f32 0.0, %v775
    %v777 = vpop.f32.mrb[0].mxu0
    %778 = vmatprep.mubr.f32.mxu0 0.0
    %779 = vmatmul.mubr.f32.gmra.mrb[0].mxu0 %v536
    %v780 = vpop.f32.mrb[0].mxu0
    %v781 = vadd.f32 0.0, %v780
    %v782 = vpop.f32.mrb[0].mxu0
    %783 = vdwg.mxu0
    %v784 = vmul.f32 %v776, %v776
    %v785 = vmul.f32 %v781, %v781
    %788 = vrot.lane.b32.xlu0 %v784, 1
    %v789 = vpop.permute.xlu0 %788
    %790 = vrot.lane.b32.xlu0 %v785, 1
    %v791 = vpop.permute.xlu0 %790
    %v794 = vsub.f32 %v776, %v789
    %v795 = vsub.f32 %v781, %v791
    %v796 = vmax.f32 %v794, 0.0
    %v797 = vmax.f32 %v795, 0.0
    %v798 = vadd.f32 %v796, 1e-05
    %v799 = vadd.f32 %v797, 1e-05
    %v800 = vrsqrt.pop %v798
    %v801 = vrsqrt.pop %v799
    %803 = vset.pattern.permute.xlu0 0
    %804 = vperm.xlu0 %803, %v776
    %v805 = vpop.permute.xlu0 %804
    %808 = vset.pattern.permute.xlu0 0
    %809 = vperm.xlu0 %808, %v781
    %v810 = vpop.permute.xlu0 %809
    %v812 = vsub.f32 %v507, %v805
    %v813 = vsub.f32 %v512, %v810
    %v814 = vmul.f32 %v800, %v646
    %v815 = vmul.f32 %v801, %v648
    %817 = vset.pattern.permute.xlu0 1
    %818 = vperm.xlu0 %817, %v814
    %v819 = vpop.permute.xlu0 %818
    %822 = vset.pattern.permute.xlu0 1
    %823 = vperm.xlu0 %822, %v815
    %v824 = vpop.permute.xlu0 %823
    %v826 = vmul.f32 %v812, %v819
    %v827 = vmul.f32 %v813, %v824
    %v828 = vadd.f32 %v826, %v668
    %v829 = vadd.f32 %v827, %v673
    %v830 = vmax.f32 %v828, 0.0
    %v831 = vmax.f32 %v829, 0.0
    %v832 = vld [vmem:[%s1] sm:$0xff]
    %s833 = scalar_lea.vmem %s1, 8
    %v834 = vld [vmem:[%s833] sm:$0xff]
    %836 = vrot.lane.b32.xlu0 %v832, 127
    %v837 = vpop.permute.xlu0 %836
    %839 = vrot.lane.b32.xlu0 %v832, 126
    %v840 = vpop.permute.xlu0 %839
    %842 = vrot.lane.b32.xlu0 %v832, 125
    %v843 = vpop.permute.xlu0 %842
    %845 = vrot.lane.b32.xlu0 %v832, 124
    %v846 = vpop.permute.xlu0 %845
    %849 = vrot.lane.b32.xlu0 %v834, 127
    %v850 = vpop.permute.xlu0 %849
    %851 = vrot.lane.b32.xlu0 %v834, 126
    %v852 = vpop.permute.xlu0 %851
    %853 = vrot.lane.b32.xlu0 %v834, 125
    %v854 = vpop.permute.xlu0 %853
    %855 = vrot.lane.b32.xlu0 %v834, 124
    %v856 = vpop.permute.xlu0 %855
    %857 = vrot.lane.b32.xlu0 %v834, 19
    %v858 = vpop.permute.xlu0 %857
    %859 = vrot.lane.b32.xlu0 %v850, 19
    %v860 = vpop.permute.xlu0 %859
    %861 = vrot.lane.b32.xlu0 %v852, 19
    %v862 = vpop.permute.xlu0 %861
    %863 = vrot.lane.b32.xlu0 %v854, 19
    %v864 = vpop.permute.xlu0 %863
    %865 = vrot.lane.b32.xlu0 %v856, 19
    %v866 = vpop.permute.xlu0 %865
    %vm872 = vcmask 154624
    %v873 = vsel %vm872, %v832, %v858
    %v874 = vsel %vm872, %v837, %v860
    %v875 = vsel %vm872, %v840, %v862
    %v876 = vsel %vm872, %v843, %v864
    %v877 = vsel %vm872, %v846, %v866
    %v878 = vld [vmem:[%s2 + $0x30] sm:$0xff]
    %v879 = vld [vmem:[%s2 + $0x38] sm:$0xff]
    %882 = vrot.lane.b32.xlu0 %v677, 127
    %v883 = vpop.permute.xlu0 %882
    %884 = vrot.lane.b32.xlu0 %v678, 127
    %v885 = vpop.permute.xlu0 %884
    %888 = vrot.lane.b32.xlu0 %v677, 126
    %v889 = vpop.permute.xlu0 %888
    %890 = vrot.lane.b32.xlu0 %v678, 126
    %v891 = vpop.permute.xlu0 %890
    %894 = vrot.lane.b32.xlu0 %v677, 125
    %v895 = vpop.permute.xlu0 %894
    %896 = vrot.lane.b32.xlu0 %v678, 125
    %v897 = vpop.permute.xlu0 %896
    %900 = vrot.lane.b32.xlu0 %v677, 124
    %v901 = vpop.permute.xlu0 %900
    %902 = vrot.lane.b32.xlu0 %v678, 124
    %v903 = vpop.permute.xlu0 %902
    %908 = vrot.lane.b32.xlu0 %v830, 127
    %v909 = vpop.permute.xlu0 %908
    %910 = vrot.lane.b32.xlu0 %v831, 127
    %v911 = vpop.permute.xlu0 %910
    %912 = vrot.lane.b32.xlu0 %v830, 126
    %v913 = vpop.permute.xlu0 %912
    %914 = vrot.lane.b32.xlu0 %v831, 126
    %v915 = vpop.permute.xlu0 %914
    %916 = vrot.lane.b32.xlu0 %v830, 125
    %v917 = vpop.permute.xlu0 %916
    %918 = vrot.lane.b32.xlu0 %v831, 125
    %v919 = vpop.permute.xlu0 %918
    %920 = vrot.lane.b32.xlu0 %v830, 124
    %v921 = vpop.permute.xlu0 %920
    %922 = vrot.lane.b32.xlu0 %v831, 124
    %v923 = vpop.permute.xlu0 %922
    %924 = vrot.lane.b32.xlu0 %v909, 124
    %v925 = vpop.permute.xlu0 %924
    %926 = vrot.lane.b32.xlu0 %v911, 124
    %v927 = vpop.permute.xlu0 %926
    %928 = vrot.lane.b32.xlu0 %v913, 124
    %v929 = vpop.permute.xlu0 %928
    %930 = vrot.lane.b32.xlu0 %v915, 124
    %v931 = vpop.permute.xlu0 %930
    %932 = vrot.lane.b32.xlu0 %v917, 124
    %v933 = vpop.permute.xlu0 %932
    %934 = vrot.lane.b32.xlu0 %v919, 124
    %v935 = vpop.permute.xlu0 %934
    %936 = vrot.lane.b32.xlu0 %v921, 124
    %v937 = vpop.permute.xlu0 %936
    %938 = vrot.lane.b32.xlu0 %v923, 124
    %v939 = vpop.permute.xlu0 %938
    %v950 = vsel %vm872, %v677, %v921
    %v951 = vsel %vm872, %v678, %v923
    %v952 = vsel %vm872, %v883, %v925
    %v953 = vsel %vm872, %v885, %v927
    %v954 = vsel %vm872, %v889, %v929
    %v955 = vsel %vm872, %v891, %v931
    %v956 = vsel %vm872, %v895, %v933
    %v957 = vsel %vm872, %v897, %v935
    %v958 = vsel %vm872, %v901, %v937
    %v959 = vsel %vm872, %v903, %v939
    %v960 = vld [vmem:[%s2 + $0x40] sm:$0xff]
    %v961 = vld [vmem:[%s2 + $0x48] sm:$0xff]
    %vm962 = vcmask 654336
    %v964 = vsel %vm962, %v960, 0
    %v967 = vsel %vm962, %v961, 0
    %969 = vmatprep.subr.mxu0 0.0
    %970 = vmatpush1.msra.mxu0 %v950
    %971 = vmatprep.subr.mxu0 0.0
    %972 = vmatpush1.msra.mxu0 %v951
    %973 = vmatprep.subr.mxu0 0.0
    %974 = vmatpush1.msra.mxu0 %v952
    %975 = vmatprep.subr.mxu0 0.0
    %976 = vmatpush1.msra.mxu0 %v953
    %977 = vmatprep.subr.mxu0 0.0
    %978 = vmatpush1.msra.mxu0 %v954
    %979 = vmatprep.subr.mxu0 0.0
    %980 = vmatpush1.msra.mxu0 %v955
    %981 = vmatprep.subr.mxu0 0.0
    %982 = vmatpush1.msra.mxu0 %v956
    %983 = vmatprep.subr.mxu0 0.0
    %984 = vmatpush1.msra.mxu0 %v957
    %985 = vmatprep.subr.mxu0 0.0
    %986 = vmatpush1.msra.mxu0 %v958
    %987 = vmatprep.subr.mxu0 0.0
    %988 = vmatpush1.msra.mxu0 %v959
    %989 = vmatprep.subr.mxu0 0.0
    %990 = vmatpush1.msra.mxu0 0.0
    %991 = vmatprep.subr.mxu0 0.0
    %992 = vmatpush1.msra.mxu0 0.0
    %993 = vmatprep.subr.mxu0 0.0
    %994 = vmatpush1.msra.mxu0 0.0
    %995 = vmatprep.subr.mxu0 0.0
    %996 = vmatpush1.msra.mxu0 0.0
    %997 = vmatprep.subr.mxu0 0.0
    %998 = vmatpush1.msra.mxu0 0.0
    %999 = vmatprep.subr.mxu0 0.0
    %1000 = vmatpush1.msra.mxu0 0.0
    %1001 = vmatprep.subr.mxu0 0.0
    %1002 = vmatpush1.msra.mxu0 0.0
    %1003 = vmatprep.subr.mxu0 0.0
    %1004 = vmatpush1.msra.mxu0 0.0
    %1005 = vmatprep.subr.mxu0 0.0
    %1006 = vmatpush1.msra.mxu0 0.0
    %1007 = vmatprep.subr.mxu0 0.0
    %1008 = vmatpush1.msra.mxu0 0.0
    %1009 = vmatprep.subr.mxu0 0.0
    %1010 = vmatpush1.msra.mxu0 0.0
    %1011 = vmatprep.subr.mxu0 0.0
    %1012 = vmatpush1.msra.mxu0 0.0
    %1013 = vmatprep.subr.mxu0 0.0
    %1014 = vmatpush1.msra.mxu0 0.0
    %1015 = vmatprep.subr.mxu0 0.0
    %1016 = vmatpush1.msra.mxu0 0.0
    %1017 = vmatprep.subr.mxu0 0.0
    %1018 = vmatpush1.msra.mxu0 0.0
    %1019 = vmatprep.subr.mxu0 0.0
    %1020 = vmatpush1.msra.mxu0 0.0
    %1021 = vmatprep.subr.mxu0 0.0
    %1022 = vmatpush1.msra.mxu0 0.0
    %1023 = vmatprep.subr.mxu0 0.0
    %1024 = vmatpush1.msra.mxu0 0.0
    %1025 = vmatprep.subr.mxu0 0.0
    %1026 = vmatpush1.msra.mxu0 0.0
    %1027 = vmatprep.subr.mxu0 0.0
    %1028 = vmatpush1.msra.mxu0 0.0
    %1029 = vmatprep.subr.mxu0 0.0
    %1030 = vmatpush1.msra.mxu0 0.0
    %1031 = vmatprep.subr.mxu0 0.0
    %1032 = vmatpush1.msra.mxu0 0.0
    %1033 = vmatprep.mubr.f32.mxu0 0.0
    %1034 = vmatmul.mubr.f32.gmra.mrb[0].mxu0 %v964
    %v1035 = vpop.f32.mrb[0].mxu0
    %v1036 = vadd.f32 0.0, %v1035
    %v1037 = vpop.f32.mrb[0].mxu0
    %1038 = vmatprep.mubr.f32.mxu0 0.0
    %1039 = vmatmul.mubr.f32.gmra.mrb[0].mxu0 %v967
    %v1040 = vpop.f32.mrb[0].mxu0
    %v1041 = vadd.f32 0.0, %v1040
    %v1042 = vpop.f32.mrb[0].mxu0
    %1043 = vdwg.mxu0
    %v1045 = vsel %vm74, %v878, 0
    %v1048 = vsel %vm74, %v879, 0
    %1050 = vmatprep.subr.mxu0 0.0
    %1051 = vmatpush1.msra.mxu0 %v873
    %1052 = vmatprep.subr.mxu0 0.0
    %1053 = vmatpush1.msra.mxu0 %v874
    %1054 = vmatprep.subr.mxu0 0.0
    %1055 = vmatpush1.msra.mxu0 %v875
    %1056 = vmatprep.subr.mxu0 0.0
    %1057 = vmatpush1.msra.mxu0 %v876
    %1058 = vmatprep.subr.mxu0 0.0
    %1059 = vmatpush1.msra.mxu0 %v877
    %1060 = vmatprep.subr.mxu0 0.0
    %1061 = vmatpush1.msra.mxu0 0.0
    %1062 = vmatprep.subr.mxu0 0.0
    %1063 = vmatpush1.msra.mxu0 0.0
    %1064 = vmatprep.subr.mxu0 0.0
    %1065 = vmatpush1.msra.mxu0 0.0
    %1066 = vmatprep.subr.mxu0 0.0
    %1067 = vmatpush1.msra.mxu0 0.0
    %1068 = vmatprep.subr.mxu0 0.0
    %1069 = vmatpush1.msra.mxu0 0.0
    %1070 = vmatprep.subr.mxu0 0.0
    %1071 = vmatpush1.msra.mxu0 0.0
    %1072 = vmatprep.subr.mxu0 0.0
    %1073 = vmatpush1.msra.mxu0 0.0
    %1074 = vmatprep.subr.mxu0 0.0
    %1075 = vmatpush1.msra.mxu0 0.0
    %1076 = vmatprep.subr.mxu0 0.0
    %1077 = vmatpush1.msra.mxu0 0.0
    %1078 = vmatprep.subr.mxu0 0.0
    %1079 = vmatpush1.msra.mxu0 0.0
    %1080 = vmatprep.subr.mxu0 0.0
    %1081 = vmatpush1.msra.mxu0 0.0
    %1082 = vmatprep.subr.mxu0 0.0
    %1083 = vmatpush1.msra.mxu0 0.0
    %1084 = vmatprep.subr.mxu0 0.0
    %1085 = vmatpush1.msra.mxu0 0.0
    %1086 = vmatprep.subr.mxu0 0.0
    %1087 = vmatpush1.msra.mxu0 0.0
    %1088 = vmatprep.subr.mxu0 0.0
    %1089 = vmatpush1.msra.mxu0 0.0
    %1090 = vmatprep.subr.mxu0 0.0
    %1091 = vmatpush1.msra.mxu0 0.0
    %1092 = vmatprep.subr.mxu0 0.0
    %1093 = vmatpush1.msra.mxu0 0.0
    %1094 = vmatprep.subr.mxu0 0.0
    %1095 = vmatpush1.msra.mxu0 0.0
    %1096 = vmatprep.subr.mxu0 0.0
    %1097 = vmatpush1.msra.mxu0 0.0
    %1098 = vmatprep.subr.mxu0 0.0
    %1099 = vmatpush1.msra.mxu0 0.0
    %1100 = vmatprep.subr.mxu0 0.0
    %1101 = vmatpush1.msra.mxu0 0.0
    %1102 = vmatprep.subr.mxu0 0.0
    %1103 = vmatpush1.msra.mxu0 0.0
    %1104 = vmatprep.subr.mxu0 0.0
    %1105 = vmatpush1.msra.mxu0 0.0
    %1106 = vmatprep.subr.mxu0 0.0
    %1107 = vmatpush1.msra.mxu0 0.0
    %1108 = vmatprep.subr.mxu0 0.0
    %1109 = vmatpush1.msra.mxu0 0.0
    %1110 = vmatprep.subr.mxu0 0.0
    %1111 = vmatpush1.msra.mxu0 0.0
    %1112 = vmatprep.subr.mxu0 0.0
    %1113 = vmatpush1.msra.mxu0 0.0
    %1114 = vmatprep.mubr.f32.mxu0 0.0
    %1115 = vmatmul.mubr.f32.gmra.mrb[0].mxu0 %v1045
    %v1116 = vpop.f32.mrb[0].mxu0
    %v1117 = vadd.f32 %v1036, %v1116
    %v1118 = vpop.f32.mrb[0].mxu0
    %1119 = vmatprep.mubr.f32.mxu0 0.0
    %1120 = vmatmul.mubr.f32.gmra.mrb[0].mxu0 %v1048
    %v1121 = vpop.f32.mrb[0].mxu0
    %v1122 = vadd.f32 %v1041, %v1121
    %v1123 = vpop.f32.mrb[0].mxu0
    %1124 = vdwg.mxu0
    %v1125 = vld [vmem:[%s3 + $0x48] sm:$0xff]
    %v1126 = vld [vmem:[%s3 + $0x50] sm:$0xff]
    %v1127 = vld [vmem:[%s3 + $0x58] sm:$0xff]
    %v1128 = vld [vmem:[%s3 + $0x60] sm:$0xff]
    %v1129 = vld [vmem:[%s3 + $0x68] sm:$0xff]
    %v1130 = vld [vmem:[%s3 + $0x70] sm:$0xff]
    %v1131 = vld [vmem:[%s2 + $0x50] sm:$0xff]
    %v1132 = vld [vmem:[%s2 + $0x58] sm:$0xff]
    %1134 = vset.pattern.permute.xlu0 0
    %1135 = vperm.xlu0 %1134, %v1125
    %v1136 = vpop.permute.xlu0 %1135
    %1139 = vset.pattern.permute.xlu0 0
    %1140 = vperm.xlu0 %1139, %v1126
    %v1141 = vpop.permute.xlu0 %1140
    %v1143 = vadd.f32 %v1117, %v1136
    %v1144 = vadd.f32 %v1122, %v1141
    %v1145 = vsel %vm872, %v1143, 0.0
    %1146 = vadd.xlane.f32.xlu0 %v1145
    %v1147 = vpop.xlane.xlu0 %1146
    %v1148 = vsel %vm872, %v1144, 0.0
    %1149 = vadd.xlane.f32.xlu0 %v1148
    %v1150 = vpop.xlane.xlu0 %1149
    %v1151 = vmul.f32 %v1143, %v1143
    %v1152 = vmul.f32 %v1144, %v1144
    %v1153 = vsel %vm872, %v1151, 0.0
    %1154 = vadd.xlane.f32.xlu0 %v1153
    %v1155 = vpop.xlane.xlu0 %1154
    %v1156 = vsel %vm872, %v1152, 0.0
    %1157 = vadd.xlane.f32.xlu0 %v1156
    %v1158 = vpop.xlane.xlu0 %1157
    %v1159 = vsel %vm155, %v1147, %v1155
    %v1160 = vsel %vm155, %v1150, %v1158
    %v1162 = vsel %vm531, %v1131, 0
    %v1165 = vsel %vm531, %v1132, 0
    %1167 = vmatprep.subr.mxu0 0.0
    %1168 = vmatpush1.msra.mxu0 %v1159
    %1169 = vmatprep.subr.mxu0 0.0
    %1170 = vmatpush1.msra.mxu0 %v1160
    %1171 = vmatprep.subr.mxu0 0.0
    %1172 = vmatpush1.msra.mxu0 0.0
    %1173 = vmatprep.subr.mxu0 0.0
    %1174 = vmatpush1.msra.mxu0 0.0
    %1175 = vmatprep.subr.mxu0 0.0
    %1176 = vmatpush1.msra.mxu0 0.0
    %1177 = vmatprep.subr.mxu0 0.0
    %1178 = vmatpush1.msra.mxu0 0.0
    %1179 = vmatprep.subr.mxu0 0.0
    %1180 = vmatpush1.msra.mxu0 0.0
    %1181 = vmatprep.subr.mxu0 0.0
    %1182 = vmatpush1.msra.mxu0 0.0
    %1183 = vmatprep.subr.mxu0 0.0
    %1184 = vmatpush1.msra.mxu0 0.0
    %1185 = vmatprep.subr.mxu0 0.0
    %1186 = vmatpush1.msra.mxu0 0.0
    %1187 = vmatprep.subr.mxu0 0.0
    %1188 = vmatpush1.msra.mxu0 0.0
    %1189 = vmatprep.subr.mxu0 0.0
    %1190 = vmatpush1.msra.mxu0 0.0
    %1191 = vmatprep.subr.mxu0 0.0
    %1192 = vmatpush1.msra.mxu0 0.0
    %1193 = vmatprep.subr.mxu0 0.0
    %1194 = vmatpush1.msra.mxu0 0.0
    %1195 = vmatprep.subr.mxu0 0.0
    %1196 = vmatpush1.msra.mxu0 0.0
    %1197 = vmatprep.subr.mxu0 0.0
    %1198 = vmatpush1.msra.mxu0 0.0
    %1199 = vmatprep.subr.mxu0 0.0
    %1200 = vmatpush1.msra.mxu0 0.0
    %1201 = vmatprep.subr.mxu0 0.0
    %1202 = vmatpush1.msra.mxu0 0.0
    %1203 = vmatprep.subr.mxu0 0.0
    %1204 = vmatpush1.msra.mxu0 0.0
    %1205 = vmatprep.subr.mxu0 0.0
    %1206 = vmatpush1.msra.mxu0 0.0
    %1207 = vmatprep.subr.mxu0 0.0
    %1208 = vmatpush1.msra.mxu0 0.0
    %1209 = vmatprep.subr.mxu0 0.0
    %1210 = vmatpush1.msra.mxu0 0.0
    %1211 = vmatprep.subr.mxu0 0.0
    %1212 = vmatpush1.msra.mxu0 0.0
    %1213 = vmatprep.subr.mxu0 0.0
    %1214 = vmatpush1.msra.mxu0 0.0
    %1215 = vmatprep.subr.mxu0 0.0
    %1216 = vmatpush1.msra.mxu0 0.0
    %1217 = vmatprep.subr.mxu0 0.0
    %1218 = vmatpush1.msra.mxu0 0.0
    %1219 = vmatprep.subr.mxu0 0.0
    %1220 = vmatpush1.msra.mxu0 0.0
    %1221 = vmatprep.subr.mxu0 0.0
    %1222 = vmatpush1.msra.mxu0 0.0
    %1223 = vmatprep.subr.mxu0 0.0
    %1224 = vmatpush1.msra.mxu0 0.0
    %1225 = vmatprep.subr.mxu0 0.0
    %1226 = vmatpush1.msra.mxu0 0.0
    %1227 = vmatprep.subr.mxu0 0.0
    %1228 = vmatpush1.msra.mxu0 0.0
    %1229 = vmatprep.subr.mxu0 0.0
    %1230 = vmatpush1.msra.mxu0 0.0
    %1231 = vmatprep.mubr.f32.mxu0 0.0
    %1232 = vmatmul.mubr.f32.gmra.mrb[0].mxu0 %v1162
    %v1233 = vpop.f32.mrb[0].mxu0
    %v1234 = vadd.f32 0.0, %v1233
    %v1235 = vpop.f32.mrb[0].mxu0
    %1236 = vmatprep.mubr.f32.mxu0 0.0
    %1237 = vmatmul.mubr.f32.gmra.mrb[0].mxu0 %v1165
    %v1238 = vpop.f32.mrb[0].mxu0
    %v1239 = vadd.f32 0.0, %v1238
    %v1240 = vpop.f32.mrb[0].mxu0
    %1241 = vdwg.mxu0
    %v1242 = vmul.f32 %v1234, %v1234
    %v1243 = vmul.f32 %v1239, %v1239
    %1246 = vrot.lane.b32.xlu0 %v1242, 1
    %v1247 = vpop.permute.xlu0 %1246
    %1248 = vrot.lane.b32.xlu0 %v1243, 1
    %v1249 = vpop.permute.xlu0 %1248
    %v1252 = vsub.f32 %v1234, %v1247
    %v1253 = vsub.f32 %v1239, %v1249
    %v1254 = vmax.f32 %v1252, 0.0
    %v1255 = vmax.f32 %v1253, 0.0
    %v1256 = vadd.f32 %v1254, 1e-05
    %v1257 = vadd.f32 %v1255, 1e-05
    %v1258 = vrsqrt.pop %v1256
    %v1259 = vrsqrt.pop %v1257
    %1261 = vset.pattern.permute.xlu0 0
    %1262 = vperm.xlu0 %1261, %v1234
    %v1263 = vpop.permute.xlu0 %1262
    %1266 = vset.pattern.permute.xlu0 0
    %1267 = vperm.xlu0 %1266, %v1239
    %v1268 = vpop.permute.xlu0 %1267
    %v1270 = vsub.f32 %v1143, %v1263
    %v1271 = vsub.f32 %v1144, %v1268
    %1274 = vrot.lane.b32.xlu0 %v1127, 1
    %v1275 = vpop.permute.xlu0 %1274
    %1276 = vrot.lane.b32.xlu0 %v1128, 1
    %v1277 = vpop.permute.xlu0 %1276
    %v1280 = vmul.f32 %v1258, %v1275
    %v1281 = vmul.f32 %v1259, %v1277
    %1283 = vset.pattern.permute.xlu0 1
    %1284 = vperm.xlu0 %1283, %v1280
    %v1285 = vpop.permute.xlu0 %1284
    %1288 = vset.pattern.permute.xlu0 1
    %1289 = vperm.xlu0 %1288, %v1281
    %v1290 = vpop.permute.xlu0 %1289
    %v1292 = vmul.f32 %v1270, %v1285
    %v1293 = vmul.f32 %v1271, %v1290
    %1295 = vset.pattern.permute.xlu0 0
    %1296 = vperm.xlu0 %1295, %v1129
    %v1297 = vpop.permute.xlu0 %1296
    %1300 = vset.pattern.permute.xlu0 0
    %1301 = vperm.xlu0 %1300, %v1130
    %v1302 = vpop.permute.xlu0 %1301
    %v1304 = vadd.f32 %v1292, %v1297
    %v1305 = vadd.f32 %v1293, %v1302
    %v1306 = vmax.f32 %v1304, 0.0
    %v1307 = vmax.f32 %v1305, 0.0
    %1310 = vrot.lane.b32.xlu0 %v1143, 109
    %v1311 = vpop.permute.xlu0 %1310
    %1312 = vrot.lane.b32.xlu0 %v1144, 109
    %v1313 = vpop.permute.xlu0 %1312
    %v1316 = vsel %vm872, %v1311, 0.0
    %1317 = vadd.xlane.f32.xlu0 %v1316
    %v1318 = vpop.xlane.xlu0 %1317
    %v1319 = vsel %vm872, %v1313, 0.0
    %1320 = vadd.xlane.f32.xlu0 %v1319
    %v1321 = vpop.xlane.xlu0 %1320
    %1324 = vrot.lane.b32.xlu0 %v1151, 109
    %v1325 = vpop.permute.xlu0 %1324
    %1326 = vrot.lane.b32.xlu0 %v1152, 109
    %v1327 = vpop.permute.xlu0 %1326
    %v1330 = vsel %vm872, %v1325, 0.0
    %1331 = vadd.xlane.f32.xlu0 %v1330
    %v1332 = vpop.xlane.xlu0 %1331
    %v1333 = vsel %vm872, %v1327, 0.0
    %1334 = vadd.xlane.f32.xlu0 %v1333
    %v1335 = vpop.xlane.xlu0 %1334
    %v1336 = vsel %vm155, %v1318, %v1332
    %v1337 = vsel %vm155, %v1321, %v1335
    %1338 = vmatprep.subr.mxu0 0.0
    %1339 = vmatpush1.msra.mxu0 %v1336
    %1340 = vmatprep.subr.mxu0 0.0
    %1341 = vmatpush1.msra.mxu0 %v1337
    %1342 = vmatprep.subr.mxu0 0.0
    %1343 = vmatpush1.msra.mxu0 0.0
    %1344 = vmatprep.subr.mxu0 0.0
    %1345 = vmatpush1.msra.mxu0 0.0
    %1346 = vmatprep.subr.mxu0 0.0
    %1347 = vmatpush1.msra.mxu0 0.0
    %1348 = vmatprep.subr.mxu0 0.0
    %1349 = vmatpush1.msra.mxu0 0.0
    %1350 = vmatprep.subr.mxu0 0.0
    %1351 = vmatpush1.msra.mxu0 0.0
    %1352 = vmatprep.subr.mxu0 0.0
    %1353 = vmatpush1.msra.mxu0 0.0
    %1354 = vmatprep.subr.mxu0 0.0
    %1355 = vmatpush1.msra.mxu0 0.0
    %1356 = vmatprep.subr.mxu0 0.0
    %1357 = vmatpush1.msra.mxu0 0.0
    %1358 = vmatprep.subr.mxu0 0.0
    %1359 = vmatpush1.msra.mxu0 0.0
    %1360 = vmatprep.subr.mxu0 0.0
    %1361 = vmatpush1.msra.mxu0 0.0
    %1362 = vmatprep.subr.mxu0 0.0
    %1363 = vmatpush1.msra.mxu0 0.0
    %1364 = vmatprep.subr.mxu0 0.0
    %1365 = vmatpush1.msra.mxu0 0.0
    %1366 = vmatprep.subr.mxu0 0.0
    %1367 = vmatpush1.msra.mxu0 0.0
    %1368 = vmatprep.subr.mxu0 0.0
    %1369 = vmatpush1.msra.mxu0 0.0
    %1370 = vmatprep.subr.mxu0 0.0
    %1371 = vmatpush1.msra.mxu0 0.0
    %1372 = vmatprep.subr.mxu0 0.0
    %1373 = vmatpush1.msra.mxu0 0.0
    %1374 = vmatprep.subr.mxu0 0.0
    %1375 = vmatpush1.msra.mxu0 0.0
    %1376 = vmatprep.subr.mxu0 0.0
    %1377 = vmatpush1.msra.mxu0 0.0
    %1378 = vmatprep.subr.mxu0 0.0
    %1379 = vmatpush1.msra.mxu0 0.0
    %1380 = vmatprep.subr.mxu0 0.0
    %1381 = vmatpush1.msra.mxu0 0.0
    %1382 = vmatprep.subr.mxu0 0.0
    %1383 = vmatpush1.msra.mxu0 0.0
    %1384 = vmatprep.subr.mxu0 0.0
    %1385 = vmatpush1.msra.mxu0 0.0
    %1386 = vmatprep.subr.mxu0 0.0
    %1387 = vmatpush1.msra.mxu0 0.0
    %1388 = vmatprep.subr.mxu0 0.0
    %1389 = vmatpush1.msra.mxu0 0.0
    %1390 = vmatprep.subr.mxu0 0.0
    %1391 = vmatpush1.msra.mxu0 0.0
    %1392 = vmatprep.subr.mxu0 0.0
    %1393 = vmatpush1.msra.mxu0 0.0
    %1394 = vmatprep.subr.mxu0 0.0
    %1395 = vmatpush1.msra.mxu0 0.0
    %1396 = vmatprep.subr.mxu0 0.0
    %1397 = vmatpush1.msra.mxu0 0.0
    %1398 = vmatprep.subr.mxu0 0.0
    %1399 = vmatpush1.msra.mxu0 0.0
    %1400 = vmatprep.subr.mxu0 0.0
    %1401 = vmatpush1.msra.mxu0 0.0
    %1402 = vmatprep.mubr.f32.mxu0 0.0
    %1403 = vmatmul.mubr.f32.gmra.mrb[0].mxu0 %v1162
    %v1404 = vpop.f32.mrb[0].mxu0
    %v1405 = vadd.f32 0.0, %v1404
    %v1406 = vpop.f32.mrb[0].mxu0
    %1407 = vmatprep.mubr.f32.mxu0 0.0
    %1408 = vmatmul.mubr.f32.gmra.mrb[0].mxu0 %v1165
    %v1409 = vpop.f32.mrb[0].mxu0
    %v1410 = vadd.f32 0.0, %v1409
    %v1411 = vpop.f32.mrb[0].mxu0
    %1412 = vdwg.mxu0
    %v1413 = vmul.f32 %v1405, %v1405
    %v1414 = vmul.f32 %v1410, %v1410
    %1417 = vrot.lane.b32.xlu0 %v1413, 1
    %v1418 = vpop.permute.xlu0 %1417
    %1419 = vrot.lane.b32.xlu0 %v1414, 1
    %v1420 = vpop.permute.xlu0 %1419
    %v1423 = vsub.f32 %v1405, %v1418
    %v1424 = vsub.f32 %v1410, %v1420
    %v1425 = vmax.f32 %v1423, 0.0
    %v1426 = vmax.f32 %v1424, 0.0
    %v1427 = vadd.f32 %v1425, 1e-05
    %v1428 = vadd.f32 %v1426, 1e-05
    %v1429 = vrsqrt.pop %v1427
    %v1430 = vrsqrt.pop %v1428
    %1432 = vset.pattern.permute.xlu0 0
    %1433 = vperm.xlu0 %1432, %v1405
    %v1434 = vpop.permute.xlu0 %1433
    %1437 = vset.pattern.permute.xlu0 0
    %1438 = vperm.xlu0 %1437, %v1410
    %v1439 = vpop.permute.xlu0 %1438
    %v1441 = vsub.f32 %v1143, %v1434
    %v1442 = vsub.f32 %v1144, %v1439
    %v1443 = vmul.f32 %v1429, %v1275
    %v1444 = vmul.f32 %v1430, %v1277
    %1446 = vset.pattern.permute.xlu0 1
    %1447 = vperm.xlu0 %1446, %v1443
    %v1448 = vpop.permute.xlu0 %1447
    %1451 = vset.pattern.permute.xlu0 1
    %1452 = vperm.xlu0 %1451, %v1444
    %v1453 = vpop.permute.xlu0 %1452
    %v1455 = vmul.f32 %v1441, %v1448
    %v1456 = vmul.f32 %v1442, %v1453
    %v1457 = vadd.f32 %v1455, %v1297
    %v1458 = vadd.f32 %v1456, %v1302
    %v1459 = vmax.f32 %v1457, 0.0
    %v1460 = vmax.f32 %v1458, 0.0
    %1461 = vst.msk [vmem:[#allocation2] sm:$0xff] %vm872, %v1306
    %1462 = vst.msk [vmem:[#allocation2 + $0x8] sm:$0xff] %vm872, %v1307
    %1465 = vrot.lane.b32.xlu0 %v1459, 109
    %v1466 = vpop.permute.xlu0 %1465
    %1467 = vrot.lane.b32.xlu0 %v1460, 109
    %v1468 = vpop.permute.xlu0 %1467
    %s1471 = scalar_lea.vmem [#allocation2], 16
    %1472 = vst.msk [vmem:[%s1471] sm:$0xff] %vm872, %v1466
    %1473 = vst.msk [vmem:[%s1471 + $0x8] sm:$0xff] %vm872, %v1468
    // Predicated region
    $region18: #{tpu_custom_call.1} parent=1 // pred_check
      _
    $region19: #{tpu_custom_call.1} parent=1 // pred_check_branch
      %1475 = sbr.rel (0) target = $region21
    $region20: #{tpu_custom_call.1} parent=1 // pred_region
      %s1477 = ssub.s32 512, 512
      %1478 = vsyncadd [#allocation3], %s1477
      %s1479 = sshll.u32 [#allocation2], 4
      %s1480 = int_to_ptr.vmem [resolvable:$true] %s1479
      %1485 = dma.vmem_to_hbm [thread:$0]  %s1480, 512, %s4, [#allocation3], 128, 128, 8
    $region21: #{tpu_custom_call.1} parent=1 // pred_fallthru
      _
    // Predicated region
    $region22: #{tpu_custom_call.1} parent=1 // pred_check
      _
    $region23: #{tpu_custom_call.1} parent=1 // pred_check_branch
      %1487 = sbr.rel (0) target = $region25
    $region24: #{tpu_custom_call.1} parent=1 // pred_region
      %1488 = dma.done [#allocation3], 512
    $region25: #{tpu_custom_call.1} parent=1 // pred_fallthru
      _
    %1489 = vsyncpa [#allocation3], 1

</llo_original>
